<compile_context>
chip_gen: v5e
topology: v5e:2x2
jax: 0.10.0
libtpu: 0.0.40
codegen_flags: <defaults>
</compile_context>

<pallas_src>
import jax
import jax.numpy as jnp
from jax.experimental import pallas as pl
from jax.experimental.pallas import tpu as pltpu

ALL_CH = 28          # `all_channel`
HALF_CH = ALL_CH // 2
FEAT_CH = 1024       # input channels of extra_convs (ResNeXt layer3 output)

# fused-pack row offsets (all starts are multiples of 8 sublanes)
SEG_F, SEG_G, SEG_GH, SEG_FX, SEG_FA, SEG_UH, SEG_RH = 0, 16, 32, 40, 72, 104, 136
W1_ROWS = 168
SEG_UX, SEG_RX, SEG_OX = 0, 32, 64
W2_ROWS = 96

NEG_INF = -1e30

PARAM_NAMES = (
    "wc", "bc",
    "wf", "bf", "wg", "bg", "wh", "bh", "wgate",
    "wfus_x", "wfus_a", "bfus",
    "wu_x", "wu_h", "bu",
    "wr_x", "wr_h", "br",
    "wo_x", "wo_h", "bo",
)


# --------------------------------------------------------------------------- #
# fused kernel: projection (streamed over spatial tiles) + attention gate +
#               fusion conv + ConvGRU + global avg pools
# --------------------------------------------------------------------------- #
def _make_kernel(n_real, n_pad, tile_n):
    inv_n = 1.0 / float(n_real)

    def kernel(feat_ref, wct_ref, bc_ref, w1_ref, b1_ref, w2_ref, b2_ref,
               woh_ref, map1_ref, map2_ref, p1_ref, p2_ref):
        k = pl.program_id(1)

        # ---- extra_convs: 1x1 conv 1024 -> 28 on this spatial tile (MXU) ----
        xt = jnp.dot(wct_ref[...], feat_ref[0],
                     preferred_element_type=jnp.float32) + bc_ref[...]
        start = pl.multiple_of(k * tile_n, tile_n)
        # map_1 block is resident across the k axis -> doubles as the x1 buffer
        map1_ref[0, :, pl.ds(start, tile_n)] = xt

        # ---- once the full (28, N) x1 map is resident: head math ----
        @pl.when(k == pl.num_programs(1) - 1)
        def _():
            x1 = map1_ref[0]                                   # (28, N) f32
            x1b = x1.astype(jnp.bfloat16)

            # one fused MXU call for every 1x1 conv that consumes x1
            fused1 = jnp.dot(w1_ref[...], x1b,
                             preferred_element_type=jnp.float32) + b1_ref[...]
            f_b = fused1[SEG_F:SEG_F + 16].astype(jnp.bfloat16)   # extra_projf
            g_b = fused1[SEG_G:SEG_G + 16].astype(jnp.bfloat16)   # extra_projg
            gh8 = fused1[SEG_GH:SEG_GH + 8]       # row 0 = wgate @ projh(x1)
            fx = fused1[SEG_FX:SEG_FX + ALL_CH]   # wfus_x@x1 + bfus
            fa = fused1[SEG_FA:SEG_FA + ALL_CH]   # wfus_a@x1
            uh = fused1[SEG_UH:SEG_UH + ALL_CH]   # wu_h@x1 + bu
            rh = fused1[SEG_RH:SEG_RH + ALL_CH]   # wr_h@x1 + br

            # scores[j, i] = <g[:, j], f[:, i]>  (== torch attention[i, j]);
            # zero-padded channel rows do not change the contraction.
            scores = jax.lax.dot_general(
                g_b, f_b, (((0,), (0,)), ((), ())),
                preferred_element_type=jnp.float32)            # (N, N)
            if n_real < n_pad:
                col_i = jax.lax.broadcasted_iota(jnp.int32, (1, n_pad), 1)
                scores = jnp.where(col_i < n_real, scores, NEG_INF)
            scores = scores - jnp.max(scores, axis=-1, keepdims=True)
            e = jnp.exp(scores)
            p = e / jnp.sum(e, axis=-1, keepdims=True)         # exact softmax

            # gate: sigmoid(wgate @ (h @ A)) == sigmoid((wgate @ h) @ A)
            m8 = jax.lax.dot_general(
                gh8.astype(jnp.bfloat16), p.astype(jnp.bfloat16),
                (((1,), (1,)), ((), ())),
                preferred_element_type=jnp.float32)            # (8, N)
            mask = jax.nn.sigmoid(m8[0:1, :])                  # (1, N)

            # extra_conv_fusion(cat(x1, mask*x1)) == fx + mask * fa
            x2 = fx + mask * fa

            # ConvGRU gates consuming x2: one more fused MXU call
            fused2 = jnp.dot(w2_ref[...], x2.astype(jnp.bfloat16),
                             preferred_element_type=jnp.float32) + b2_ref[...]
            ux = fused2[SEG_UX:SEG_UX + ALL_CH]    # wu_x@x2
            rx = fused2[SEG_RX:SEG_RX + ALL_CH]    # wr_x@x2
            ox = fused2[SEG_OX:SEG_OX + ALL_CH]    # wo_x@x2 + bo

            update = jax.nn.sigmoid(ux + uh)
            reset = jax.nn.sigmoid(rx + rh)
            cand = jnp.tanh(ox + jnp.dot(woh_ref[...],
                                         (x1 * reset).astype(jnp.bfloat16),
                                         preferred_element_type=jnp.float32))
            new_state = x1 * (1.0 - update) + cand * update    # (28, N)

            map2_ref[0] = new_state

            # global average pools over the valid spatial positions only
            if n_real < n_pad:
                valid = (jax.lax.broadcasted_iota(jnp.int32, (1, n_pad), 1)
                         < n_real).astype(jnp.float32)
                p1_ref[0] = jnp.sum(x1 * valid, axis=-1, keepdims=True) * inv_n
                p2_ref[0] = jnp.sum(new_state * valid, axis=-1,
                                    keepdims=True) * inv_n
            else:
                p1_ref[0] = jnp.sum(x1, axis=-1, keepdims=True) * inv_n
                p2_ref[0] = jnp.sum(new_state, axis=-1, keepdims=True) * inv_n

    return kernel


# --------------------------------------------------------------------------- #
# host-side weight packing (channel-major, sublane-aligned segments)
# --------------------------------------------------------------------------- #
def _pack_head_params(params):
    f32 = jnp.float32

    def wt(name):                        # (C_in, C_out) -> (C_out, C_in)
        return jnp.asarray(params[name], f32).T

    def bcol(name):
        return jnp.asarray(params[name], f32).reshape(-1, 1)

    def seg(w, b, rows):
        co = w.shape[0]
        wp = jnp.zeros((rows, ALL_CH), f32).at[:co].set(w)
        bp = jnp.zeros((rows, 1), f32).at[:co].set(b)
        return wp, bp

    wgate_row = jnp.asarray(params["wgate"], f32).T               # (1, 28)
    wgh = wgate_row @ wt("wh")                                    # fold gate into projh
    bgh = wgate_row @ bcol("bh")                                  # (1, 1)
    zeros_b = jnp.zeros((ALL_CH, 1), f32)

    segs1 = [seg(wt("wf"), bcol("bf"), 16),
             seg(wt("wg"), bcol("bg"), 16),
             seg(wgh, bgh, 8),
             seg(wt("wfus_x"), bcol("bfus"), 32),
             seg(wt("wfus_a"), zeros_b, 32),
             seg(wt("wu_h"), bcol("bu"), 32),
             seg(wt("wr_h"), bcol("br"), 32)]
    w1 = jnp.concatenate([s[0] for s in segs1], axis=0)           # (168, 28)
    b1 = jnp.concatenate([s[1] for s in segs1], axis=0)           # (168, 1)

    segs2 = [seg(wt("wu_x"), zeros_b, 32),
             seg(wt("wr_x"), zeros_b, 32),
             seg(wt("wo_x"), bcol("bo"), 32)]
    w2 = jnp.concatenate([s[0] for s in segs2], axis=0)           # (96, 28)
    b2 = jnp.concatenate([s[1] for s in segs2], axis=0)           # (96, 1)

    woh = wt("wo_h")                                              # (28, 28)
    # MXU operands in bf16 (f32 accumulate); biases stay f32.
    return (w1.astype(jnp.bfloat16), b1, w2.astype(jnp.bfloat16), b2,
            woh.astype(jnp.bfloat16))


def _pick_tile_n(n_pad):
    for t in (1024, 512, 384, 256, 128):
        if n_pad % t == 0:
            return t
    return n_pad


def snet_forward(feat_nchw, params):
    """feat_nchw: (B, 1024, H, W) backbone features (output of `self.features`).
    Returns (x1ss (B,28), x2ss (B,28), map_1 (B,28,H,W), map_2 (B,28,H,W))."""
    B, C, H, W = feat_nchw.shape
    assert C == FEAT_CH
    n_real = H * W
    n_pad = ((n_real + 127) // 128) * 128          # lane-dense spatial axis
    assert n_pad <= 1024, "N too large for the fully materialized (N,N) attention"

    tile_n = _pick_tile_n(n_pad)
    nk = n_pad // tile_n

    # channel-major (B, C, N): pure reshape of NCHW; zero-pad spatial; bf16
    # confined to MXU operands.
    feat = feat_nchw.reshape(B, C, n_real)
    if n_pad != n_real:
        feat = jnp.pad(feat, ((0, 0), (0, 0), (0, n_pad - n_real)))
    feat = feat.astype(jnp.bfloat16)

    wc_t = jnp.asarray(params["wc"], jnp.float32).T.astype(jnp.bfloat16)   # (28, 1024)
    bc_col = jnp.asarray(params["bc"], jnp.float32).reshape(-1, 1)         # (28, 1)
    w1, b1, w2, b2, woh = _pack_head_params(params)

    kernel = _make_kernel(n_real, n_pad, tile_n)

    map1_p, map2_p, p1, p2 = pl.pallas_call(
        kernel,
        out_shape=(
            jax.ShapeDtypeStruct((B, ALL_CH, n_pad), jnp.float32),
            jax.ShapeDtypeStruct((B, ALL_CH, n_pad), jnp.float32),
            jax.ShapeDtypeStruct((B, ALL_CH, 1), jnp.float32),
            jax.ShapeDtypeStruct((B, ALL_CH, 1), jnp.float32),
        ),
        grid=(B, nk),
        in_specs=[
            pl.BlockSpec((1, C, tile_n), lambda b, k: (b, 0, k)),
            pl.BlockSpec((ALL_CH, C), lambda b, k: (0, 0)),
            pl.BlockSpec((ALL_CH, 1), lambda b, k: (0, 0)),
            pl.BlockSpec((W1_ROWS, ALL_CH), lambda b, k: (0, 0)),
            pl.BlockSpec((W1_ROWS, 1), lambda b, k: (0, 0)),
            pl.BlockSpec((W2_ROWS, ALL_CH), lambda b, k: (0, 0)),
            pl.BlockSpec((W2_ROWS, 1), lambda b, k: (0, 0)),
            pl.BlockSpec((ALL_CH, ALL_CH), lambda b, k: (0, 0)),
        ],
        out_specs=[
            pl.BlockSpec((1, ALL_CH, n_pad), lambda b, k: (b, 0, 0)),
            pl.BlockSpec((1, ALL_CH, n_pad), lambda b, k: (b, 0, 0)),
            pl.BlockSpec((1, ALL_CH, 1), lambda b, k: (b, 0, 0)),
            pl.BlockSpec((1, ALL_CH, 1), lambda b, k: (b, 0, 0)),
        ],
        compiler_params=pltpu.CompilerParams(
            dimension_semantics=("parallel", "arbitrary"),
            vmem_limit_bytes=28 * 1024 * 1024),
    )(feat, wc_t, bc_col, w1, b1, w2, b2, woh)

    map1 = map1_p[:, :, :n_real].reshape(B, ALL_CH, H, W)
    map2 = map2_p[:, :, :n_real].reshape(B, ALL_CH, H, W)
    return p1.reshape(B, ALL_CH), p2.reshape(B, ALL_CH), map1, map2


# --------------------------------------------------------------------------- #
# pure-JAX reference (original, unfused math) for correctness checking
# --------------------------------------------------------------------------- #
def snet_reference(feat_nchw, params):
    """The 1024->28 projection uses the same bf16 operands as the kernel (f32
    accumulate); the head math stays in f32 to bound the kernel-side error."""
    B, C, H, W = feat_nchw.shape
    N = H * W
    x = jnp.transpose(feat_nchw.reshape(B, C, N), (0, 2, 1))              # (B, N, C)
    x1 = jnp.einsum("bnc,co->bno", x.astype(jnp.bfloat16),
                    params["wc"].astype(jnp.bfloat16),
                    preferred_element_type=jnp.float32) + params["bc"]    # (B, N, 28)
    f = x1 @ params["wf"] + params["bf"]
    g = x1 @ params["wg"] + params["bg"]
    h = x1 @ params["wh"] + params["bh"]
    attention = jnp.einsum("bic,bjc->bij", f, g)        # torch bmm(f^T, g)
    A = jax.nn.softmax(attention, axis=1)               # softmax over i (dim=1)
    sa = jnp.einsum("bic,bij->bjc", h, A)               # torch bmm(h, attention)
    mask = jax.nn.sigmoid(sa @ params["wgate"])
    att_out = mask * x1
    x2 = x1 @ params["wfus_x"] + att_out @ params["wfus_a"] + params["bfus"]
    u = jax.nn.sigmoid(x2 @ params["wu_x"] + x1 @ params["wu_h"] + params["bu"])
    r = jax.nn.sigmoid(x2 @ params["wr_x"] + x1 @ params["wr_h"] + params["br"])
    c = jnp.tanh(x2 @ params["wo_x"] + (x1 * r) @ params["wo_h"] + params["bo"])
    new = x1 * (1.0 - u) + c * u
    map1 = jnp.transpose(x1, (0, 2, 1)).reshape(B, ALL_CH, H, W)
    map2 = jnp.transpose(new, (0, 2, 1)).reshape(B, ALL_CH, H, W)
    return jnp.mean(x1, axis=1), jnp.mean(new, axis=1), map1, map2


def init_params(key):
    # Matches the module init: every Conv2d weight ~ N(0, 0.01); biases are small
    # synthetic normals (module leaves them at PyTorch defaults).
    keys = iter(jax.random.split(key, len(PARAM_NAMES)))

    def nrm(shape):
        return 0.01 * jax.random.normal(next(keys), shape, jnp.float32)

    p = {}
    p["wc"], p["bc"] = nrm((FEAT_CH, ALL_CH)), nrm((1, ALL_CH))
    p["wf"], p["bf"] = nrm((ALL_CH, HALF_CH)), nrm((1, HALF_CH))
    p["wg"], p["bg"] = nrm((ALL_CH, HALF_CH)), nrm((1, HALF_CH))
    p["wh"], p["bh"] = nrm((ALL_CH, ALL_CH)), nrm((1, ALL_CH))
    p["wgate"] = nrm((ALL_CH, 1))
    p["wfus_x"], p["wfus_a"], p["bfus"] = nrm((ALL_CH, ALL_CH)), nrm((ALL_CH, ALL_CH)), nrm((1, ALL_CH))
    p["wu_x"], p["wu_h"], p["bu"] = nrm((ALL_CH, ALL_CH)), nrm((ALL_CH, ALL_CH)), nrm((1, ALL_CH))
    p["wr_x"], p["wr_h"], p["br"] = nrm((ALL_CH, ALL_CH)), nrm((ALL_CH, ALL_CH)), nrm((1, ALL_CH))
    p["wo_x"], p["wo_h"], p["bo"] = nrm((ALL_CH, ALL_CH)), nrm((ALL_CH, ALL_CH)), nrm((1, ALL_CH))
    return p


if __name__ == "__main__":
    key = jax.random.PRNGKey(0)
    k_feat, k_params = jax.random.split(key)
    params = init_params(k_params)

    fwd = jax.jit(snet_forward)

    # two spatial sizes: N=64 exercises the pad+mask path, N=128 the exact path
    for (H, W) in ((8, 8), (16, 8)):
        feat = jax.random.normal(k_feat, (2, FEAT_CH, H, W), jnp.float32)
        got = jax.block_until_ready(fwd(feat, params))
        ref = jax.block_until_ready(snet_reference(feat, params))
        for name, g, r in zip(("x1ss", "x2ss", "map1", "map2"), got, ref):
            err = float(jnp.max(jnp.abs(g - r)))
            if err > 2e-3:
                raise AssertionError(
                    f"{name} @ {H}x{W}: kernel/reference mismatch, max abs err = {err}")

    print("KERNEL_OK")
</pallas_src>

<mosaic_0001>
module attributes {stable_mosaic.version = 11 : i64} {
  func.func @kernel(%arg0: i32, %arg1: i32, %arg2: memref<1x1024x128xbf16, #tpu.memory_space<vmem>>, %arg3: memref<28x1024xbf16, #tpu.memory_space<vmem>>, %arg4: memref<28x1xf32, #tpu.memory_space<vmem>>, %arg5: memref<168x28xbf16, #tpu.memory_space<vmem>>, %arg6: memref<168x1xf32, #tpu.memory_space<vmem>>, %arg7: memref<96x28xbf16, #tpu.memory_space<vmem>>, %arg8: memref<96x1xf32, #tpu.memory_space<vmem>>, %arg9: memref<28x28xbf16, #tpu.memory_space<vmem>>, %arg10: memref<1x28x128xf32, #tpu.memory_space<vmem>>, %arg11: memref<1x28x128xf32, #tpu.memory_space<vmem>>, %arg12: memref<1x28x1xf32, #tpu.memory_space<vmem>>, %arg13: memref<1x28x1xf32, #tpu.memory_space<vmem>>) attributes {dimension_semantics = [#tpu.dimension_semantics<parallel>, #tpu.dimension_semantics<arbitrary>], iteration_bounds = array<i64: 2, 1>, scalar_prefetch = 0 : i64, scratch_operands = 0 : i64, tpu.core_type = #tpu.core_type<tc>, window_params = [{transform_indices = @transform_0, window_bounds = array<i64: 1, 1024, 128>}, {pipeline_mode = #tpu.pipeline_mode<synchronous>, transform_indices = @transform_1, window_bounds = array<i64: 28, 1024>}, {pipeline_mode = #tpu.pipeline_mode<synchronous>, transform_indices = @transform_2, window_bounds = array<i64: 28, 1>}, {pipeline_mode = #tpu.pipeline_mode<synchronous>, transform_indices = @transform_3, window_bounds = array<i64: 168, 28>}, {pipeline_mode = #tpu.pipeline_mode<synchronous>, transform_indices = @transform_4, window_bounds = array<i64: 168, 1>}, {pipeline_mode = #tpu.pipeline_mode<synchronous>, transform_indices = @transform_5, window_bounds = array<i64: 96, 28>}, {pipeline_mode = #tpu.pipeline_mode<synchronous>, transform_indices = @transform_6, window_bounds = array<i64: 96, 1>}, {pipeline_mode = #tpu.pipeline_mode<synchronous>, transform_indices = @transform_7, window_bounds = array<i64: 28, 28>}, {transform_indices = @transform_8, window_bounds = array<i64: 1, 28, 128>}, {transform_indices = @transform_9, window_bounds = array<i64: 1, 28, 128>}, {transform_indices = @transform_10, window_bounds = array<i64: 1, 28, 1>}, {transform_indices = @transform_11, window_bounds = array<i64: 1, 28, 1>}]} {
    %c0 = arith.constant 0 : index
    %c0_0 = arith.constant 0 : index
    %0 = vector.load %arg3[%c0, %c0_0] : memref<28x1024xbf16, #tpu.memory_space<vmem>>, vector<28x1024xbf16>
    %c0_1 = arith.constant 0 : index
    %c0_2 = arith.constant 0 : index
    %c0_3 = arith.constant 0 : index
    %1 = vector.load %arg2[%c0_1, %c0_2, %c0_3] : memref<1x1024x128xbf16, #tpu.memory_space<vmem>>, vector<1x1024x128xbf16>
    %2 = vector.shape_cast %1 : vector<1x1024x128xbf16> to vector<1024x128xbf16>
    %cst = arith.constant dense<0.000000e+00> : vector<28x128xf32>
    %3 = tpu.matmul %0, %2, %cst {dimension_numbers = #tpu.dot_dimension_numbers<[1], [0], [0], [1], [0, 0, 1, 1], [], []>} : vector<28x1024xbf16>, vector<1024x128xbf16>, vector<28x128xf32> -> vector<28x128xf32>
    %c0_4 = arith.constant 0 : index
    %c0_5 = arith.constant 0 : index
    %4 = vector.load %arg4[%c0_4, %c0_5] : memref<28x1xf32, #tpu.memory_space<vmem>>, vector<28x1xf32>
    %5 = vector.broadcast %4 : vector<28x1xf32> to vector<28x128xf32>
    %6 = arith.addf %3, %5 : vector<28x128xf32>
    %c128_i32 = arith.constant 128 : i32
    %7 = arith.muli %arg1, %c128_i32 : i32
    %8 = tpu.assume_multiple %7, 128 : i32
    %c0_6 = arith.constant 0 : index
    %c0_7 = arith.constant 0 : index
    %9 = arith.index_cast %8 : i32 to index
    %10 = vector.load %arg10[%c0_6, %c0_7, %9] : memref<1x28x128xf32, #tpu.memory_space<vmem>>, vector<1x28x128xf32>
    %11 = vector.shape_cast %10 : vector<1x28x128xf32> to vector<28x128xf32>
    %12 = vector.shape_cast %6 : vector<28x128xf32> to vector<1x28x128xf32>
    tpu.vector_store %arg10[%c0_6, %c0_7, %9], %12 {strides = array<i32>} : memref<1x28x128xf32, #tpu.memory_space<vmem>>, vector<1x28x128xf32>,
    %c0_i32 = arith.constant 0 : i32
    %13 = arith.cmpi eq, %arg1, %c0_i32 : i32
    %14 = arith.extui %13 : i1 to i32
    %c0_i32_8 = arith.constant 0 : i32
    %15 = arith.cmpi ne, %14, %c0_i32_8 : i32
    scf.if %15 {
      %c0_9 = arith.constant 0 : index
      %c0_10 = arith.constant 0 : index
      %c0_11 = arith.constant 0 : index
      %16 = vector.load %arg10[%c0_9, %c0_10, %c0_11] : memref<1x28x128xf32, #tpu.memory_space<vmem>>, vector<1x28x128xf32>
      %17 = vector.shape_cast %16 : vector<1x28x128xf32> to vector<28x128xf32>
      %18 = arith.truncf %17 : vector<28x128xf32> to vector<28x128xbf16>
      %c0_12 = arith.constant 0 : index
      %c0_13 = arith.constant 0 : index
      %19 = vector.load %arg5[%c0_12, %c0_13] : memref<168x28xbf16, #tpu.memory_space<vmem>>, vector<168x28xbf16>
      %cst_14 = arith.constant dense<0.000000e+00> : vector<168x128xf32>
      %20 = tpu.matmul %19, %18, %cst_14 {dimension_numbers = #tpu.dot_dimension_numbers<[1], [0], [0], [1], [0, 0, 1, 1], [], []>} : vector<168x28xbf16>, vector<28x128xbf16>, vector<168x128xf32> -> vector<168x128xf32>
      %c0_15 = arith.constant 0 : index
      %c0_16 = arith.constant 0 : index
      %21 = vector.load %arg6[%c0_15, %c0_16] : memref<168x1xf32, #tpu.memory_space<vmem>>, vector<168x1xf32>
      %22 = vector.broadcast %21 : vector<168x1xf32> to vector<168x128xf32>
      %23 = arith.addf %20, %22 : vector<168x128xf32>
      %24 = vector.extract_strided_slice %23 {offsets = [0, 0], sizes = [16, 128], strides = [1, 1]} : vector<168x128xf32> to vector<16x128xf32>
      %25 = arith.truncf %24 : vector<16x128xf32> to vector<16x128xbf16>
      %26 = vector.extract_strided_slice %23 {offsets = [16, 0], sizes = [16, 128], strides = [1, 1]} : vector<168x128xf32> to vector<16x128xf32>
      %27 = arith.truncf %26 : vector<16x128xf32> to vector<16x128xbf16>
      %28 = vector.extract_strided_slice %23 {offsets = [32, 0], sizes = [8, 128], strides = [1, 1]} : vector<168x128xf32> to vector<8x128xf32>
      %29 = vector.extract_strided_slice %23 {offsets = [40, 0], sizes = [28, 128], strides = [1, 1]} : vector<168x128xf32> to vector<28x128xf32>
      %30 = vector.extract_strided_slice %23 {offsets = [72, 0], sizes = [28, 128], strides = [1, 1]} : vector<168x128xf32> to vector<28x128xf32>
      %31 = vector.extract_strided_slice %23 {offsets = [104, 0], sizes = [28, 128], strides = [1, 1]} : vector<168x128xf32> to vector<28x128xf32>
      %32 = vector.extract_strided_slice %23 {offsets = [136, 0], sizes = [28, 128], strides = [1, 1]} : vector<168x128xf32> to vector<28x128xf32>
      %cst_17 = arith.constant dense<0.000000e+00> : vector<128x128xf32>
      %33 = tpu.matmul %27, %25, %cst_17 {dimension_numbers = #tpu.dot_dimension_numbers<[0], [0], [1], [1], [0, 1, 1, 1], [], []>} : vector<16x128xbf16>, vector<16x128xbf16>, vector<128x128xf32> -> vector<128x128xf32>
      %34 = tpu.iota {dimensions = array<i32: 1>} : vector<1x128xi32>
      %c64_i32 = arith.constant 64 : i32
      %35 = vector.broadcast %c64_i32 : i32 to vector<1x128xi32>
      %36 = arith.cmpi slt, %34, %35 : vector<1x128xi32>
      %cst_18 = arith.constant -1.000000e+30 : f32
      %37 = vector.shape_cast %36 : vector<1x128xi1> to vector<1x128xi1>
      %38 = vector.broadcast %37 : vector<1x128xi1> to vector<128x128xi1>
      %39 = vector.broadcast %cst_18 : f32 to vector<128x128xf32>
      %40 = arith.select %38, %33, %39 : vector<128x128xi1>, vector<128x128xf32>
      %cst_19 = arith.constant dense<0xFF800000> : vector<128xf32>
      %41 = vector.multi_reduction <maximumf>, %40, %cst_19 [1] : vector<128x128xf32> to vector<128xf32>
      %42 = vector.shape_cast %41 : vector<128xf32> to vector<128x1xf32>
      %43 = vector.broadcast %42 : vector<128x1xf32> to vector<128x128xf32>
      %44 = arith.subf %40, %43 : vector<128x128xf32>
      %45 = math.exp %44 : vector<128x128xf32>
      %cst_20 = arith.constant dense<0.000000e+00> : vector<128xf32>
      %46 = vector.multi_reduction <add>, %45, %cst_20 [1] : vector<128x128xf32> to vector<128xf32>
      %47 = vector.shape_cast %46 : vector<128xf32> to vector<128x1xf32>
      %48 = vector.broadcast %47 : vector<128x1xf32> to vector<128x128xf32>
      %49 = arith.divf %45, %48 : vector<128x128xf32>
      %50 = arith.truncf %28 : vector<8x128xf32> to vector<8x128xbf16>
      %51 = arith.truncf %49 : vector<128x128xf32> to vector<128x128xbf16>
      %cst_21 = arith.constant dense<0.000000e+00> : vector<8x128xf32>
      %52 = tpu.matmul %50, %51, %cst_21 {dimension_numbers = #tpu.dot_dimension_numbers<[1], [1], [0], [0], [0, 0, 1, 0], [], []>} : vector<8x128xbf16>, vector<128x128xbf16>, vector<8x128xf32> -> vector<8x128xf32>
      %53 = vector.extract_strided_slice %52 {offsets = [0, 0], sizes = [1, 128], strides = [1, 1]} : vector<8x128xf32> to vector<1x128xf32>
      %54 = arith.negf %53 : vector<1x128xf32>
      %55 = math.exp %54 : vector<1x128xf32>
      %cst_22 = arith.constant 1.000000e+00 : f32
      %56 = vector.broadcast %cst_22 : f32 to vector<1x128xf32>
      %57 = arith.addf %56, %55 : vector<1x128xf32>
      %58 = arith.divf %56, %57 : vector<1x128xf32>
      %59 = vector.broadcast %58 : vector<1x128xf32> to vector<28x128xf32>
      %60 = arith.mulf %59, %30 : vector<28x128xf32>
      %61 = arith.addf %29, %60 : vector<28x128xf32>
      %c0_23 = arith.constant 0 : index
      %c0_24 = arith.constant 0 : index
      %62 = vector.load %arg7[%c0_23, %c0_24] : memref<96x28xbf16, #tpu.memory_space<vmem>>, vector<96x28xbf16>
      %63 = arith.truncf %61 : vector<28x128xf32> to vector<28x128xbf16>
      %cst_25 = arith.constant dense<0.000000e+00> : vector<96x128xf32>
      %64 = tpu.matmul %62, %63, %cst_25 {dimension_numbers = #tpu.dot_dimension_numbers<[1], [0], [0], [1], [0, 0, 1, 1], [], []>} : vector<96x28xbf16>, vector<28x128xbf16>, vector<96x128xf32> -> vector<96x128xf32>
      %c0_26 = arith.constant 0 : index
      %c0_27 = arith.constant 0 : index
      %65 = vector.load %arg8[%c0_26, %c0_27] : memref<96x1xf32, #tpu.memory_space<vmem>>, vector<96x1xf32>
      %66 = vector.broadcast %65 : vector<96x1xf32> to vector<96x128xf32>
      %67 = arith.addf %64, %66 : vector<96x128xf32>
      %68 = vector.extract_strided_slice %67 {offsets = [0, 0], sizes = [28, 128], strides = [1, 1]} : vector<96x128xf32> to vector<28x128xf32>
      %69 = vector.extract_strided_slice %67 {offsets = [32, 0], sizes = [28, 128], strides = [1, 1]} : vector<96x128xf32> to vector<28x128xf32>
      %70 = vector.extract_strided_slice %67 {offsets = [64, 0], sizes = [28, 128], strides = [1, 1]} : vector<96x128xf32> to vector<28x128xf32>
      %71 = arith.addf %68, %31 : vector<28x128xf32>
      %72 = arith.negf %71 : vector<28x128xf32>
      %73 = math.exp %72 : vector<28x128xf32>
      %cst_28 = arith.constant 1.000000e+00 : f32
      %74 = vector.broadcast %cst_28 : f32 to vector<28x128xf32>
      %75 = arith.addf %74, %73 : vector<28x128xf32>
      %76 = arith.divf %74, %75 : vector<28x128xf32>
      %77 = arith.addf %69, %32 : vector<28x128xf32>
      %78 = arith.negf %77 : vector<28x128xf32>
      %79 = math.exp %78 : vector<28x128xf32>
      %cst_29 = arith.constant 1.000000e+00 : f32
      %80 = vector.broadcast %cst_29 : f32 to vector<28x128xf32>
      %81 = arith.addf %80, %79 : vector<28x128xf32>
      %82 = arith.divf %80, %81 : vector<28x128xf32>
      %c0_30 = arith.constant 0 : index
      %c0_31 = arith.constant 0 : index
      %83 = vector.load %arg9[%c0_30, %c0_31] : memref<28x28xbf16, #tpu.memory_space<vmem>>, vector<28x28xbf16>
      %84 = arith.mulf %17, %82 : vector<28x128xf32>
      %85 = arith.truncf %84 : vector<28x128xf32> to vector<28x128xbf16>
      %cst_32 = arith.constant dense<0.000000e+00> : vector<28x128xf32>
      %86 = tpu.matmul %83, %85, %cst_32 {dimension_numbers = #tpu.dot_dimension_numbers<[1], [0], [0], [1], [0, 0, 1, 1], [], []>} : vector<28x28xbf16>, vector<28x128xbf16>, vector<28x128xf32> -> vector<28x128xf32>
      %87 = arith.addf %70, %86 : vector<28x128xf32>
      %88 = math.tanh %87 : vector<28x128xf32>
      %cst_33 = arith.constant 1.000000e+00 : f32
      %89 = vector.broadcast %cst_33 : f32 to vector<28x128xf32>
      %90 = arith.subf %89, %76 : vector<28x128xf32>
      %91 = arith.mulf %17, %90 : vector<28x128xf32>
      %92 = arith.mulf %88, %76 : vector<28x128xf32>
      %93 = arith.addf %91, %92 : vector<28x128xf32>
      %c0_34 = arith.constant 0 : index
      %c0_35 = arith.constant 0 : index
      %c0_36 = arith.constant 0 : index
      %94 = vector.load %arg11[%c0_34, %c0_35, %c0_36] : memref<1x28x128xf32, #tpu.memory_space<vmem>>, vector<1x28x128xf32>
      %95 = vector.shape_cast %94 : vector<1x28x128xf32> to vector<28x128xf32>
      %96 = vector.shape_cast %93 : vector<28x128xf32> to vector<1x28x128xf32>
      tpu.vector_store %arg11[%c0_34, %c0_35, %c0_36], %96 {strides = array<i32>} : memref<1x28x128xf32, #tpu.memory_space<vmem>>, vector<1x28x128xf32>,
      %97 = tpu.iota {dimensions = array<i32: 1>} : vector<1x128xi32>
      %c64_i32_37 = arith.constant 64 : i32
      %98 = vector.broadcast %c64_i32_37 : i32 to vector<1x128xi32>
      %99 = arith.cmpi slt, %97, %98 : vector<1x128xi32>
      %100 = arith.extui %99 : vector<1x128xi1> to vector<1x128xi32>
      %101 = arith.sitofp %100 : vector<1x128xi32> to vector<1x128xf32>
      %102 = vector.broadcast %101 : vector<1x128xf32> to vector<28x128xf32>
      %103 = arith.mulf %17, %102 : vector<28x128xf32>
      %cst_38 = arith.constant dense<0.000000e+00> : vector<28xf32>
      %104 = vector.multi_reduction <add>, %103, %cst_38 [1] : vector<28x128xf32> to vector<28xf32>
      %105 = vector.shape_cast %104 : vector<28xf32> to vector<28x1xf32>
      %cst_39 = arith.constant 1.562500e-02 : f32
      %106 = vector.broadcast %cst_39 : f32 to vector<28x1xf32>
      %107 = arith.mulf %105, %106 : vector<28x1xf32>
      %c0_40 = arith.constant 0 : index
      %c0_41 = arith.constant 0 : index
      %c0_42 = arith.constant 0 : index
      %108 = vector.load %arg12[%c0_40, %c0_41, %c0_42] : memref<1x28x1xf32, #tpu.memory_space<vmem>>, vector<1x28x1xf32>
      %109 = vector.shape_cast %108 : vector<1x28x1xf32> to vector<28x1xf32>
      %110 = vector.shape_cast %107 : vector<28x1xf32> to vector<1x28x1xf32>
      tpu.vector_store %arg12[%c0_40, %c0_41, %c0_42], %110 {strides = array<i32>} : memref<1x28x1xf32, #tpu.memory_space<vmem>>, vector<1x28x1xf32>,
      %111 = vector.broadcast %101 : vector<1x128xf32> to vector<28x128xf32>
      %112 = arith.mulf %93, %111 : vector<28x128xf32>
      %cst_43 = arith.constant dense<0.000000e+00> : vector<28xf32>
      %113 = vector.multi_reduction <add>, %112, %cst_43 [1] : vector<28x128xf32> to vector<28xf32>
      %114 = vector.shape_cast %113 : vector<28xf32> to vector<28x1xf32>
      %cst_44 = arith.constant 1.562500e-02 : f32
      %115 = vector.broadcast %cst_44 : f32 to vector<28x1xf32>
      %116 = arith.mulf %114, %115 : vector<28x1xf32>
      %c0_45 = arith.constant 0 : index
      %c0_46 = arith.constant 0 : index
      %c0_47 = arith.constant 0 : index
      %117 = vector.load %arg13[%c0_45, %c0_46, %c0_47] : memref<1x28x1xf32, #tpu.memory_space<vmem>>, vector<1x28x1xf32>
      %118 = vector.shape_cast %117 : vector<1x28x1xf32> to vector<28x1xf32>
      %119 = vector.shape_cast %116 : vector<28x1xf32> to vector<1x28x1xf32>
      tpu.vector_store %arg13[%c0_45, %c0_46, %c0_47], %119 {strides = array<i32>} : memref<1x28x1xf32, #tpu.memory_space<vmem>>, vector<1x28x1xf32>,
    } else {
    }
    return
  }
  func.func @transform_0(%arg0: i32, %arg1: i32) -> (i32, i32, i32) {
    %c0_i32 = arith.constant 0 : i32
    %c0_i32_0 = arith.constant 0 : i32
    return %arg0, %c0_i32, %arg1 : i32, i32, i32
  }
  func.func @transform_1(%arg0: i32, %arg1: i32) -> (i32, i32) {
    %c0_i32 = arith.constant 0 : i32
    %c0_i32_0 = arith.constant 0 : i32
    %c0_i32_1 = arith.constant 0 : i32
    return %c0_i32, %c0_i32_0 : i32, i32
  }
  func.func @transform_2(%arg0: i32, %arg1: i32) -> (i32, i32) {
    %c0_i32 = arith.constant 0 : i32
    %c0_i32_0 = arith.constant 0 : i32
    %c0_i32_1 = arith.constant 0 : i32
    return %c0_i32, %c0_i32_0 : i32, i32
  }
  func.func @transform_3(%arg0: i32, %arg1: i32) -> (i32, i32) {
    %c0_i32 = arith.constant 0 : i32
    %c0_i32_0 = arith.constant 0 : i32
    %c0_i32_1 = arith.constant 0 : i32
    return %c0_i32, %c0_i32_0 : i32, i32
  }
  func.func @transform_4(%arg0: i32, %arg1: i32) -> (i32, i32) {
    %c0_i32 = arith.constant 0 : i32
    %c0_i32_0 = arith.constant 0 : i32
    %c0_i32_1 = arith.constant 0 : i32
    return %c0_i32, %c0_i32_0 : i32, i32
  }
  func.func @transform_5(%arg0: i32, %arg1: i32) -> (i32, i32) {
    %c0_i32 = arith.constant 0 : i32
    %c0_i32_0 = arith.constant 0 : i32
    %c0_i32_1 = arith.constant 0 : i32
    return %c0_i32, %c0_i32_0 : i32, i32
  }
  func.func @transform_6(%arg0: i32, %arg1: i32) -> (i32, i32) {
    %c0_i32 = arith.constant 0 : i32
    %c0_i32_0 = arith.constant 0 : i32
    %c0_i32_1 = arith.constant 0 : i32
    return %c0_i32, %c0_i32_0 : i32, i32
  }
  func.func @transform_7(%arg0: i32, %arg1: i32) -> (i32, i32) {
    %c0_i32 = arith.constant 0 : i32
    %c0_i32_0 = arith.constant 0 : i32
    %c0_i32_1 = arith.constant 0 : i32
    return %c0_i32, %c0_i32_0 : i32, i32
  }
  func.func @transform_8(%arg0: i32, %arg1: i32) -> (i32, i32, i32) {
    %c0_i32 = arith.constant 0 : i32
    %c0_i32_0 = arith.constant 0 : i32
    %c0_i32_1 = arith.constant 0 : i32
    return %arg0, %c0_i32, %c0_i32_0 : i32, i32, i32
  }
  func.func @transform_9(%arg0: i32, %arg1: i32) -> (i32, i32, i32) {
    %c0_i32 = arith.constant 0 : i32
    %c0_i32_0 = arith.constant 0 : i32
    %c0_i32_1 = arith.constant 0 : i32
    return %arg0, %c0_i32, %c0_i32_0 : i32, i32, i32
  }
  func.func @transform_10(%arg0: i32, %arg1: i32) -> (i32, i32, i32) {
    %c0_i32 = arith.constant 0 : i32
    %c0_i32_0 = arith.constant 0 : i32
    %c0_i32_1 = arith.constant 0 : i32
    return %arg0, %c0_i32, %c0_i32_0 : i32, i32, i32
  }
  func.func @transform_11(%arg0: i32, %arg1: i32) -> (i32, i32, i32) {
    %c0_i32 = arith.constant 0 : i32
    %c0_i32_0 = arith.constant 0 : i32
    %c0_i32_1 = arith.constant 0 : i32
    return %arg0, %c0_i32, %c0_i32_0 : i32, i32, i32
  }
}

</mosaic_0001>

<llo_original>
// kernel: snet_forward.1
$region0: #{snet_forward.1}
  #allocation0 [shape = 'u32[]', space=smem, size = 0x4, offset = 0x4, fixed_abs, tag = 'smem constant byte address 0x4 - core index']
  #allocation1 [shape = 'u32[72,128]{1,0:T(1,128)}', space=vmem, size = 0x9000, scoped, tag = 'internal scratch']
  %s0 = inlined_call_operand.vmem [shape: bf16[2,1024,128], index: 0, kind: input, shape index: {}]
  %s1 = inlined_call_operand.vmem [shape: bf16[28,1024], index: 1, kind: input, shape index: {}]
  %s2 = inlined_call_operand.vmem [shape: f32[28,1], index: 2, kind: input, shape index: {}]
  %s3 = inlined_call_operand.vmem [shape: bf16[168,28], index: 3, kind: input, shape index: {}]
  %s4 = inlined_call_operand.vmem [shape: f32[168,1], index: 4, kind: input, shape index: {}]
  %s5 = inlined_call_operand.vmem [shape: bf16[96,28], index: 5, kind: input, shape index: {}]
  %s6 = inlined_call_operand.vmem [shape: f32[96,1], index: 6, kind: input, shape index: {}]
  %s7 = inlined_call_operand.vmem [shape: bf16[28,28], index: 7, kind: input, shape index: {}]
  %s8 = inlined_call_operand.vmem [shape: f32[2,28,128], index: 8, kind: output, shape index: {0}]
  %s9 = inlined_call_operand.vmem [shape: f32[2,28,128], index: 9, kind: output, shape index: {1}]
  %s10 = inlined_call_operand.vmem [shape: f32[2,28,1], index: 10, kind: output, shape index: {2}]
  %s11 = inlined_call_operand.vmem [shape: f32[2,28,1], index: 11, kind: output, shape index: {3}]
  %12 = xla_tuple %s8, %s9, %s10, %s11
  %s13 = sld [smem:[#allocation0]]
  $region93: #{snet_forward.1} parent=0
    _
  %s15 = ssub.s32 1, %s13
  %s16 = scalar_select 0, %s15, %s13
  loop: start=0, step=1, limit=4
  $region2: #{snet_forward.1} parent=0 // loop_pre_header
    _
  $region3: #{snet_forward.1} parent=0 // loop_header
    %s18 = sphi 0, %s22
    %p19 = scmp.ge.s32.totalorder %s18, 4
    %s25 = sphi 0, %s37
    %s26 = sphi 0, %s33
    %s27 = sphi 0, %s25
    %s28 = sphi 0, %s26
    %s29 = sphi 0, %s27
    %s30 = sphi 0, %s28
    %s42 = sphi 0, %s44
    %s45 = sphi 0, %s42
    %s46 = sphi 0, %s45
    %s62 = sphi 0, %s46
    %s66 = sphi 0, %s66
    %s68 = sphi 0, %s66
    %s69 = sphi 0, %s68
    %s83 = sphi 0, %s69
    %s87 = sphi 0, %s87
    %s89 = sphi 0, %s87
    %s90 = sphi 0, %s89
    %s104 = sphi 0, %s90
    %s108 = sphi 0, %s108
    %s110 = sphi 0, %s108
    %s111 = sphi 0, %s110
    %s125 = sphi 0, %s111
    %s129 = sphi 0, %s129
    %s131 = sphi 0, %s129
    %s132 = sphi 0, %s131
    %s146 = sphi 0, %s132
    %s150 = sphi 0, %s150
    %s152 = sphi 0, %s150
    %s153 = sphi 0, %s152
    %s167 = sphi 0, %s153
    %s171 = sphi 0, %s171
    %s173 = sphi 0, %s171
    %s174 = sphi 0, %s173
    %s188 = sphi 0, %s174
    %s192 = sphi 0, %s192
    %s194 = sphi 0, %s192
    %s195 = sphi 0, %s194
    %s209 = sphi 0, %s195
    %s215 = sphi 0, %s217
    %s218 = sphi 0, %s215
    %s219 = sphi 0, %s218
    %s235 = sphi 0, %s219
    %s241 = sphi 0, %s243
    %s244 = sphi 0, %s241
    %s245 = sphi 0, %s244
    %s261 = sphi 0, %s245
    %s267 = sphi 0, %s269
    %s270 = sphi 0, %s267
    %s271 = sphi 0, %s270
    %s287 = sphi 0, %s271
    %s293 = sphi 0, %s295
    %s296 = sphi 0, %s293
    %s297 = sphi 0, %s296
    %s313 = sphi 0, %s297
  $region4: #{snet_forward.1} parent=0 // loop_header_branch
    %21 = sbr.rel (%p19) target = $region8
  $region5: #{snet_forward.1} parent=0 // loop_body
    %s23 = ssub.s32 %s18, 1
    %s24 = ssub.s32 %s18, 2
    %s31 = sadd.s32 1, %s26
    %p32 = scmp.ge.s32.totalorder %s31, 1
    %s33 = scalar_select %p32, 0, %s31
    %s34 = sadd.s32 1, %s25
    %s35 = scalar_select %p32, %s34, %s25
    %p36 = scmp.ge.s32.totalorder %s35, 2
    %s37 = scalar_select %p36, 0, %s35
    %s38 = ssub.s32 %s25, %s37
    %s39 = ssub.s32 %s26, %s33
    %s40 = sor.u32 %s38, %s39
    %p41 = scmp.eq.s32.totalorder %s40, 0
    %s43 = sadd.s32 %s42, 1
    %s44 = scalar_select %p41, %s42, %s43
    %p47 = pneg %p41
    %p48 = scmp.eq.s32.totalorder %s18, 1
    %p49 = por %p47, %p48
    %p50 = scmp.ne.s32.totalorder %s42, %s45
    %p51 = scmp.eq.s32.totalorder %s18, 0
    %p52 = por %p50, %p51
    %p53 = scmp.ne.s32.totalorder %s42, %s45
    %p54 = scmp.eq.s32.totalorder %s23, 1
    %p55 = por %p53, %p54
    %p56 = scmp.ne.s32.totalorder %s45, %s46
    %p57 = scmp.eq.s32.totalorder %s23, 0
    %p58 = por %p56, %p57
    %p59 = scmp.ne.s32.totalorder %s45, %s46
    %p60 = scmp.eq.s32.totalorder %s24, 1
    %p61 = por %p59, %p60
    %p63 = scmp.ne.s32.totalorder %s46, %s62
    %p64 = scmp.eq.s32.totalorder %s24, 0
    %p65 = por %p63, %p64
    %s67 = sadd.s32 %s66, 1
    %p70 = scmp.eq.s32.totalorder %s18, 1
    %p71 = scmp.ne.s32.totalorder %s66, %s68
    %p72 = scmp.eq.s32.totalorder %s18, 0
    %p73 = por %p71, %p72
    %p74 = scmp.ne.s32.totalorder %s66, %s68
    %p75 = scmp.eq.s32.totalorder %s23, 1
    %p76 = por %p74, %p75
    %p77 = scmp.ne.s32.totalorder %s68, %s69
    %p78 = scmp.eq.s32.totalorder %s23, 0
    %p79 = por %p77, %p78
    %p80 = scmp.ne.s32.totalorder %s68, %s69
    %p81 = scmp.eq.s32.totalorder %s24, 1
    %p82 = por %p80, %p81
    %p84 = scmp.ne.s32.totalorder %s69, %s83
    %p85 = scmp.eq.s32.totalorder %s24, 0
    %p86 = por %p84, %p85
    %s88 = sadd.s32 %s87, 1
    %p91 = scmp.eq.s32.totalorder %s18, 1
    %p92 = scmp.ne.s32.totalorder %s87, %s89
    %p93 = scmp.eq.s32.totalorder %s18, 0
    %p94 = por %p92, %p93
    %p95 = scmp.ne.s32.totalorder %s87, %s89
    %p96 = scmp.eq.s32.totalorder %s23, 1
    %p97 = por %p95, %p96
    %p98 = scmp.ne.s32.totalorder %s89, %s90
    %p99 = scmp.eq.s32.totalorder %s23, 0
    %p100 = por %p98, %p99
    %p101 = scmp.ne.s32.totalorder %s89, %s90
    %p102 = scmp.eq.s32.totalorder %s24, 1
    %p103 = por %p101, %p102
    %p105 = scmp.ne.s32.totalorder %s90, %s104
    %p106 = scmp.eq.s32.totalorder %s24, 0
    %p107 = por %p105, %p106
    %s109 = sadd.s32 %s108, 1
    %p112 = scmp.eq.s32.totalorder %s18, 1
    %p113 = scmp.ne.s32.totalorder %s108, %s110
    %p114 = scmp.eq.s32.totalorder %s18, 0
    %p115 = por %p113, %p114
    %p116 = scmp.ne.s32.totalorder %s108, %s110
    %p117 = scmp.eq.s32.totalorder %s23, 1
    %p118 = por %p116, %p117
    %p119 = scmp.ne.s32.totalorder %s110, %s111
    %p120 = scmp.eq.s32.totalorder %s23, 0
    %p121 = por %p119, %p120
    %p122 = scmp.ne.s32.totalorder %s110, %s111
    %p123 = scmp.eq.s32.totalorder %s24, 1
    %p124 = por %p122, %p123
    %p126 = scmp.ne.s32.totalorder %s111, %s125
    %p127 = scmp.eq.s32.totalorder %s24, 0
    %p128 = por %p126, %p127
    %s130 = sadd.s32 %s129, 1
    %p133 = scmp.eq.s32.totalorder %s18, 1
    %p134 = scmp.ne.s32.totalorder %s129, %s131
    %p135 = scmp.eq.s32.totalorder %s18, 0
    %p136 = por %p134, %p135
    %p137 = scmp.ne.s32.totalorder %s129, %s131
    %p138 = scmp.eq.s32.totalorder %s23, 1
    %p139 = por %p137, %p138
    %p140 = scmp.ne.s32.totalorder %s131, %s132
    %p141 = scmp.eq.s32.totalorder %s23, 0
    %p142 = por %p140, %p141
    %p143 = scmp.ne.s32.totalorder %s131, %s132
    %p144 = scmp.eq.s32.totalorder %s24, 1
    %p145 = por %p143, %p144
    %p147 = scmp.ne.s32.totalorder %s132, %s146
    %p148 = scmp.eq.s32.totalorder %s24, 0
    %p149 = por %p147, %p148
    %s151 = sadd.s32 %s150, 1
    %p154 = scmp.eq.s32.totalorder %s18, 1
    %p155 = scmp.ne.s32.totalorder %s150, %s152
    %p156 = scmp.eq.s32.totalorder %s18, 0
    %p157 = por %p155, %p156
    %p158 = scmp.ne.s32.totalorder %s150, %s152
    %p159 = scmp.eq.s32.totalorder %s23, 1
    %p160 = por %p158, %p159
    %p161 = scmp.ne.s32.totalorder %s152, %s153
    %p162 = scmp.eq.s32.totalorder %s23, 0
    %p163 = por %p161, %p162
    %p164 = scmp.ne.s32.totalorder %s152, %s153
    %p165 = scmp.eq.s32.totalorder %s24, 1
    %p166 = por %p164, %p165
    %p168 = scmp.ne.s32.totalorder %s153, %s167
    %p169 = scmp.eq.s32.totalorder %s24, 0
    %p170 = por %p168, %p169
    %s172 = sadd.s32 %s171, 1
    %p175 = scmp.eq.s32.totalorder %s18, 1
    %p176 = scmp.ne.s32.totalorder %s171, %s173
    %p177 = scmp.eq.s32.totalorder %s18, 0
    %p178 = por %p176, %p177
    %p179 = scmp.ne.s32.totalorder %s171, %s173
    %p180 = scmp.eq.s32.totalorder %s23, 1
    %p181 = por %p179, %p180
    %p182 = scmp.ne.s32.totalorder %s173, %s174
    %p183 = scmp.eq.s32.totalorder %s23, 0
    %p184 = por %p182, %p183
    %p185 = scmp.ne.s32.totalorder %s173, %s174
    %p186 = scmp.eq.s32.totalorder %s24, 1
    %p187 = por %p185, %p186
    %p189 = scmp.ne.s32.totalorder %s174, %s188
    %p190 = scmp.eq.s32.totalorder %s24, 0
    %p191 = por %p189, %p190
    %s193 = sadd.s32 %s192, 1
    %p196 = scmp.eq.s32.totalorder %s18, 1
    %p197 = scmp.ne.s32.totalorder %s192, %s194
    %p198 = scmp.eq.s32.totalorder %s18, 0
    %p199 = por %p197, %p198
    %p200 = scmp.ne.s32.totalorder %s192, %s194
    %p201 = scmp.eq.s32.totalorder %s23, 1
    %p202 = por %p200, %p201
    %p203 = scmp.ne.s32.totalorder %s194, %s195
    %p204 = scmp.eq.s32.totalorder %s23, 0
    %p205 = por %p203, %p204
    %p206 = scmp.ne.s32.totalorder %s194, %s195
    %p207 = scmp.eq.s32.totalorder %s24, 1
    %p208 = por %p206, %p207
    %p210 = scmp.ne.s32.totalorder %s195, %s209
    %p211 = scmp.eq.s32.totalorder %s24, 0
    %p212 = por %p210, %p211
    %s213 = ssub.s32 %s25, %s37
    %p214 = scmp.eq.s32.totalorder %s213, 0
    %s216 = sadd.s32 %s215, 1
    %s217 = scalar_select %p214, %s215, %s216
    %p220 = pneg %p214
    %p221 = scmp.eq.s32.totalorder %s18, 1
    %p222 = por %p220, %p221
    %p223 = scmp.ne.s32.totalorder %s215, %s218
    %p224 = scmp.eq.s32.totalorder %s18, 0
    %p225 = por %p223, %p224
    %p226 = scmp.ne.s32.totalorder %s215, %s218
    %p227 = scmp.eq.s32.totalorder %s23, 1
    %p228 = por %p226, %p227
    %p229 = scmp.ne.s32.totalorder %s218, %s219
    %p230 = scmp.eq.s32.totalorder %s23, 0
    %p231 = por %p229, %p230
    %p232 = scmp.ne.s32.totalorder %s218, %s219
    %p233 = scmp.eq.s32.totalorder %s24, 1
    %p234 = por %p232, %p233
    %p236 = scmp.ne.s32.totalorder %s219, %s235
    %p237 = scmp.eq.s32.totalorder %s24, 0
    %p238 = por %p236, %p237
    %s239 = ssub.s32 %s25, %s37
    %p240 = scmp.eq.s32.totalorder %s239, 0
    %s242 = sadd.s32 %s241, 1
    %s243 = scalar_select %p240, %s241, %s242
    %p246 = pneg %p240
    %p247 = scmp.eq.s32.totalorder %s18, 1
    %p248 = por %p246, %p247
    %p249 = scmp.ne.s32.totalorder %s241, %s244
    %p250 = scmp.eq.s32.totalorder %s18, 0
    %p251 = por %p249, %p250
    %p252 = scmp.ne.s32.totalorder %s241, %s244
    %p253 = scmp.eq.s32.totalorder %s23, 1
    %p254 = por %p252, %p253
    %p255 = scmp.ne.s32.totalorder %s244, %s245
    %p256 = scmp.eq.s32.totalorder %s23, 0
    %p257 = por %p255, %p256
    %p258 = scmp.ne.s32.totalorder %s244, %s245
    %p259 = scmp.eq.s32.totalorder %s24, 1
    %p260 = por %p258, %p259
    %p262 = scmp.ne.s32.totalorder %s245, %s261
    %p263 = scmp.eq.s32.totalorder %s24, 0
    %p264 = por %p262, %p263
    %s265 = ssub.s32 %s25, %s37
    %p266 = scmp.eq.s32.totalorder %s265, 0
    %s268 = sadd.s32 %s267, 1
    %s269 = scalar_select %p266, %s267, %s268
    %p272 = pneg %p266
    %p273 = scmp.eq.s32.totalorder %s18, 1
    %p274 = por %p272, %p273
    %p275 = scmp.ne.s32.totalorder %s267, %s270
    %p276 = scmp.eq.s32.totalorder %s18, 0
    %p277 = por %p275, %p276
    %p278 = scmp.ne.s32.totalorder %s267, %s270
    %p279 = scmp.eq.s32.totalorder %s23, 1
    %p280 = por %p278, %p279
    %p281 = scmp.ne.s32.totalorder %s270, %s271
    %p282 = scmp.eq.s32.totalorder %s23, 0
    %p283 = por %p281, %p282
    %p284 = scmp.ne.s32.totalorder %s270, %s271
    %p285 = scmp.eq.s32.totalorder %s24, 1
    %p286 = por %p284, %p285
    %p288 = scmp.ne.s32.totalorder %s271, %s287
    %p289 = scmp.eq.s32.totalorder %s24, 0
    %p290 = por %p288, %p289
    %s291 = ssub.s32 %s25, %s37
    %p292 = scmp.eq.s32.totalorder %s291, 0
    %s294 = sadd.s32 %s293, 1
    %s295 = scalar_select %p292, %s293, %s294
    %p298 = pneg %p292
    %p299 = scmp.eq.s32.totalorder %s18, 1
    %p300 = por %p298, %p299
    %p301 = scmp.ne.s32.totalorder %s293, %s296
    %p302 = scmp.eq.s32.totalorder %s18, 0
    %p303 = por %p301, %p302
    %p304 = scmp.ne.s32.totalorder %s293, %s296
    %p305 = scmp.eq.s32.totalorder %s23, 1
    %p306 = por %p304, %p305
    %p307 = scmp.ne.s32.totalorder %s296, %s297
    %p308 = scmp.eq.s32.totalorder %s23, 0
    %p309 = por %p307, %p308
    %p310 = scmp.ne.s32.totalorder %s296, %s297
    %p311 = scmp.eq.s32.totalorder %s24, 1
    %p312 = por %p310, %p311
    %p314 = scmp.ne.s32.totalorder %s297, %s313
    %p315 = scmp.eq.s32.totalorder %s24, 0
    %p316 = por %p314, %p315
    %p317 = scmp.le.s32.totalorder 1, %s18
    %p318 = scmp.lt.s32.totalorder %s18, 3
    %p319 = pnand %p317, %p318
    %p320 = pneg %p319
    // Predicated region
    $region9: #{snet_forward.1} parent=5 // pred_check
      _
    $region10: #{snet_forward.1} parent=5 // pred_check_branch
      %322 = sbr.rel (%p319) target = $region12
    $region11: #{snet_forward.1} parent=5 // pred_region
      %s323 = ssub.s32 %s18, 1
      // Predicated region
      $region13: #{snet_forward.1} parent=11 // pred_check
        %p324 = pneg %p79
      $region14: #{snet_forward.1} parent=11 // pred_check_branch
        %326 = sbr.rel (%p324) target = $region16
      $region15: #{snet_forward.1} parent=11 // pred_region
        _
      $region16: #{snet_forward.1} parent=11 // pred_fallthru
        _
      // Predicated region
      $region17: #{snet_forward.1} parent=11 // pred_check
        %p327 = pneg %p100
      $region18: #{snet_forward.1} parent=11 // pred_check_branch
        %329 = sbr.rel (%p327) target = $region20
      $region19: #{snet_forward.1} parent=11 // pred_region
        _
      $region20: #{snet_forward.1} parent=11 // pred_fallthru
        _
      // Predicated region
      $region21: #{snet_forward.1} parent=11 // pred_check
        %p330 = pneg %p121
      $region22: #{snet_forward.1} parent=11 // pred_check_branch
        %332 = sbr.rel (%p330) target = $region24
      $region23: #{snet_forward.1} parent=11 // pred_region
        _
      $region24: #{snet_forward.1} parent=11 // pred_fallthru
        _
      // Predicated region
      $region25: #{snet_forward.1} parent=11 // pred_check
        %p333 = pneg %p142
      $region26: #{snet_forward.1} parent=11 // pred_check_branch
        %335 = sbr.rel (%p333) target = $region28
      $region27: #{snet_forward.1} parent=11 // pred_region
        _
      $region28: #{snet_forward.1} parent=11 // pred_fallthru
        _
      // Predicated region
      $region29: #{snet_forward.1} parent=11 // pred_check
        %p336 = pneg %p163
      $region30: #{snet_forward.1} parent=11 // pred_check_branch
        %338 = sbr.rel (%p336) target = $region32
      $region31: #{snet_forward.1} parent=11 // pred_region
        _
      $region32: #{snet_forward.1} parent=11 // pred_fallthru
        _
      // Predicated region
      $region33: #{snet_forward.1} parent=11 // pred_check
        %p339 = pneg %p184
      $region34: #{snet_forward.1} parent=11 // pred_check_branch
        %341 = sbr.rel (%p339) target = $region36
      $region35: #{snet_forward.1} parent=11 // pred_region
        _
      $region36: #{snet_forward.1} parent=11 // pred_fallthru
        _
      // Predicated region
      $region37: #{snet_forward.1} parent=11 // pred_check
        %p342 = pneg %p205
      $region38: #{snet_forward.1} parent=11 // pred_check_branch
        %344 = sbr.rel (%p342) target = $region40
      $region39: #{snet_forward.1} parent=11 // pred_region
        _
      $region40: #{snet_forward.1} parent=11 // pred_fallthru
        _
    $region12: #{snet_forward.1} parent=5 // pred_fallthru
      _
    %p345 = scmp.lt.s32.totalorder %s18, 2
    // Predicated region
    $region41: #{snet_forward.1} parent=5 // pred_check
      %p346 = pneg %p345
    $region42: #{snet_forward.1} parent=5 // pred_check_branch
      %348 = sbr.rel (%p346) target = $region44
    $region43: #{snet_forward.1} parent=5 // pred_region
      // Predicated region
      $region45: #{snet_forward.1} parent=43 // pred_check
        %p349 = pneg %p52
      $region46: #{snet_forward.1} parent=43 // pred_check_branch
        %351 = sbr.rel (%p349) target = $region48
      $region47: #{snet_forward.1} parent=43 // pred_region
        %p352 = scmp.lt.s32.totalorder %s25, 1
        %s353 = scalar_select %p352, %s25, 1
        %p354 = scmp.lt.s32.totalorder %s26, 0
        %s355 = scalar_select %p354, %s26, 0
        %s356 = smul.addr %s353, 128
        %s357 = sadd.s32 %s355, %s356
        %s358 = smul.addr %s357, 4
        %s359 = scalar_lea.vmem %s0, %s358
      $region48: #{snet_forward.1} parent=43 // pred_fallthru
        _
    $region44: #{snet_forward.1} parent=5 // pred_fallthru
      _
    %p360 = scmp.le.s32.totalorder 1, %s18
    %p361 = scmp.lt.s32.totalorder %s18, 3
    %p362 = pnand %p360, %p361
    %p363 = pneg %p362
    // Predicated region
    $region49: #{snet_forward.1} parent=5 // pred_check
      _
    $region50: #{snet_forward.1} parent=5 // pred_check_branch
      %365 = sbr.rel (%p362) target = $region52
    $region51: #{snet_forward.1} parent=5 // pred_region
      %s366 = ssub.s32 %s18, 1
      %p367 = scmp.lt.s32.totalorder %s27, 1
      %s368 = scalar_select %p367, %s27, 1
      %p369 = scmp.lt.s32.totalorder %s28, 0
      %s370 = scalar_select %p369, %s28, 0
      %s371 = smul.addr %s368, 128
      %s372 = sadd.s32 %s370, %s371
      %s373 = smul.addr %s372, 4
      %s374 = scalar_lea.vmem %s0, %s373
      %p375 = pneg %p58
      %p376 = pneg %p55
      %p377 = pneg %p79
      %p378 = pneg %p76
      %p379 = pneg %p100
      %p380 = pneg %p97
      %p381 = pneg %p121
      %p382 = pneg %p118
      %p383 = pneg %p142
      %p384 = pneg %p139
      %p385 = pneg %p163
      %p386 = pneg %p160
      %p387 = pneg %p184
      %p388 = pneg %p181
      %p389 = pneg %p205
      %p390 = pneg %p202
      %p391 = pneg %p231
      %p392 = pneg %p228
      %p393 = scmp.lt.s32.totalorder %s27, 1
      %s394 = scalar_select %p393, %s27, 1
      %s395 = smul.addr %s394, 4
      %s396 = smul.addr %s395, 8
      %s397 = scalar_lea.vmem %s8, %s396
      %p398 = pneg %p257
      %p399 = pneg %p254
      %p400 = scmp.lt.s32.totalorder %s27, 1
      %s401 = scalar_select %p400, %s27, 1
      %s402 = smul.addr %s401, 4
      %s403 = smul.addr %s402, 8
      %s404 = scalar_lea.vmem %s9, %s403
      %p405 = pneg %p283
      %p406 = pneg %p280
      %p407 = scmp.lt.s32.totalorder %s27, 1
      %s408 = scalar_select %p407, %s27, 1
      %s409 = smul.addr %s408, 4
      %s410 = smul.addr %s409, 8
      %s411 = scalar_lea.vmem %s10, %s410
      %p412 = pneg %p309
      %p413 = pneg %p306
      %p414 = scmp.lt.s32.totalorder %s27, 1
      %s415 = scalar_select %p414, %s27, 1
      %s416 = smul.addr %s415, 4
      %s417 = smul.addr %s416, 8
      %s418 = scalar_lea.vmem %s11, %s417
      %p419 = scmp.lt.s32.totalorder %s27, 1
      %s420 = scalar_select %p419, %s27, 1
      %p421 = scmp.lt.s32.totalorder %s28, 0
      %s422 = scalar_select %p421, %s28, 0
      %s423 = smul.addr %s420, 128
      %s424 = sadd.s32 %s422, %s423
      %s425 = smul.addr %s424, 4
      %s426 = scalar_lea.vmem %s0, %s425
      %p427 = scmp.lt.s32.totalorder %s27, 1
      %s428 = scalar_select %p427, %s27, 1
      %s429 = smul.addr %s428, 4
      %s430 = smul.addr %s429, 8
      %s431 = scalar_lea.vmem %s8, %s430
      %p432 = scmp.lt.s32.totalorder %s27, 1
      %s433 = scalar_select %p432, %s27, 1
      %s434 = smul.addr %s433, 4
      %s435 = smul.addr %s434, 8
      %s436 = scalar_lea.vmem %s9, %s435
      %p437 = scmp.lt.s32.totalorder %s27, 1
      %s438 = scalar_select %p437, %s27, 1
      %s439 = smul.addr %s438, 4
      %s440 = smul.addr %s439, 8
      %s441 = scalar_lea.vmem %s10, %s440
      %p442 = scmp.lt.s32.totalorder %s27, 1
      %s443 = scalar_select %p442, %s27, 1
      %s444 = smul.addr %s443, 4
      %s445 = smul.addr %s444, 8
      %s446 = scalar_lea.vmem %s11, %s445
      %v448 = vld [vmem:[%s1] sm:$0xff]
      %v449 = vld [vmem:[%s1 + $0x8] sm:$0xff]
      %v450 = vld [vmem:[%s1 + $0x10] sm:$0xff]
      %v451 = vld [vmem:[%s1 + $0x18] sm:$0xff]
      %v452 = vld [vmem:[%s1 + $0x20] sm:$0xff]
      %v453 = vld [vmem:[%s1 + $0x28] sm:$0xff]
      %v454 = vld [vmem:[%s1 + $0x30] sm:$0xff]
      %v455 = vld [vmem:[%s1 + $0x38] sm:$0xff]
      %v456 = vld [vmem:[%s1 + $0x40] sm:$0xff]
      %v457 = vld [vmem:[%s1 + $0x48] sm:$0xff]
      %v458 = vld [vmem:[%s1 + $0x50] sm:$0xff]
      %v459 = vld [vmem:[%s1 + $0x58] sm:$0xff]
      %v460 = vld [vmem:[%s1 + $0x60] sm:$0x33]
      %v461 = vld [vmem:[%s1 + $0x68] sm:$0x33]
      %v462 = vld [vmem:[%s1 + $0x70] sm:$0x33]
      %v463 = vld [vmem:[%s1 + $0x78] sm:$0x33]
      %v464 = vld [vmem:[%s426] sm:$0xf]
      %v465 = vld [vmem:[%s426 + $0x4] sm:$0xf]
      %v466 = vld [vmem:[%s426 + $0x8] sm:$0xf]
      %v467 = vld [vmem:[%s426 + $0xc] sm:$0xf]
      %v468 = vld [vmem:[%s426 + $0x10] sm:$0xf]
      %v469 = vld [vmem:[%s426 + $0x14] sm:$0xf]
      %v470 = vld [vmem:[%s426 + $0x18] sm:$0xf]
      %v471 = vld [vmem:[%s426 + $0x1c] sm:$0xf]
      %v472 = vld [vmem:[%s426 + $0x20] sm:$0xf]
      %v473 = vld [vmem:[%s426 + $0x24] sm:$0xf]
      %v474 = vld [vmem:[%s426 + $0x28] sm:$0xf]
      %v475 = vld [vmem:[%s426 + $0x2c] sm:$0xf]
      %v476 = vld [vmem:[%s426 + $0x30] sm:$0xf]
      %v477 = vld [vmem:[%s426 + $0x34] sm:$0xf]
      %v478 = vld [vmem:[%s426 + $0x38] sm:$0xf]
      %v479 = vld [vmem:[%s426 + $0x3c] sm:$0xf]
      %v480 = vld [vmem:[%s426 + $0x40] sm:$0xf]
      %v481 = vld [vmem:[%s426 + $0x44] sm:$0xf]
      %v482 = vld [vmem:[%s426 + $0x48] sm:$0xf]
      %v483 = vld [vmem:[%s426 + $0x4c] sm:$0xf]
      %v484 = vld [vmem:[%s426 + $0x50] sm:$0xf]
      %v485 = vld [vmem:[%s426 + $0x54] sm:$0xf]
      %v486 = vld [vmem:[%s426 + $0x58] sm:$0xf]
      %v487 = vld [vmem:[%s426 + $0x5c] sm:$0xf]
      %v488 = vld [vmem:[%s426 + $0x60] sm:$0xf]
      %v489 = vld [vmem:[%s426 + $0x64] sm:$0xf]
      %v490 = vld [vmem:[%s426 + $0x68] sm:$0xf]
      %v491 = vld [vmem:[%s426 + $0x6c] sm:$0xf]
      %v492 = vld [vmem:[%s426 + $0x70] sm:$0xf]
      %v493 = vld [vmem:[%s426 + $0x74] sm:$0xf]
      %v494 = vld [vmem:[%s426 + $0x78] sm:$0xf]
      %v495 = vld [vmem:[%s426 + $0x7c] sm:$0xf]
      %v496 = vld [vmem:[%s426 + $0x80] sm:$0xf]
      %v497 = vld [vmem:[%s426 + $0x84] sm:$0xf]
      %v498 = vld [vmem:[%s426 + $0x88] sm:$0xf]
      %v499 = vld [vmem:[%s426 + $0x8c] sm:$0xf]
      %v500 = vld [vmem:[%s426 + $0x90] sm:$0xf]
      %v501 = vld [vmem:[%s426 + $0x94] sm:$0xf]
      %v502 = vld [vmem:[%s426 + $0x98] sm:$0xf]
      %v503 = vld [vmem:[%s426 + $0x9c] sm:$0xf]
      %v504 = vld [vmem:[%s426 + $0xa0] sm:$0xf]
      %v505 = vld [vmem:[%s426 + $0xa4] sm:$0xf]
      %v506 = vld [vmem:[%s426 + $0xa8] sm:$0xf]
      %v507 = vld [vmem:[%s426 + $0xac] sm:$0xf]
      %v508 = vld [vmem:[%s426 + $0xb0] sm:$0xf]
      %v509 = vld [vmem:[%s426 + $0xb4] sm:$0xf]
      %v510 = vld [vmem:[%s426 + $0xb8] sm:$0xf]
      %v511 = vld [vmem:[%s426 + $0xbc] sm:$0xf]
      %v512 = vld [vmem:[%s426 + $0xc0] sm:$0xf]
      %v513 = vld [vmem:[%s426 + $0xc4] sm:$0xf]
      %v514 = vld [vmem:[%s426 + $0xc8] sm:$0xf]
      %v515 = vld [vmem:[%s426 + $0xcc] sm:$0xf]
      %v516 = vld [vmem:[%s426 + $0xd0] sm:$0xf]
      %v517 = vld [vmem:[%s426 + $0xd4] sm:$0xf]
      %v518 = vld [vmem:[%s426 + $0xd8] sm:$0xf]
      %v519 = vld [vmem:[%s426 + $0xdc] sm:$0xf]
      %v520 = vld [vmem:[%s426 + $0xe0] sm:$0xf]
      %v521 = vld [vmem:[%s426 + $0xe4] sm:$0xf]
      %v522 = vld [vmem:[%s426 + $0xe8] sm:$0xf]
      %v523 = vld [vmem:[%s426 + $0xec] sm:$0xf]
      %v524 = vld [vmem:[%s426 + $0xf0] sm:$0xf]
      %v525 = vld [vmem:[%s426 + $0xf4] sm:$0xf]
      %v526 = vld [vmem:[%s426 + $0xf8] sm:$0xf]
      %v527 = vld [vmem:[%s426 + $0xfc] sm:$0xf]
      %v528 = vld [vmem:[%s426 + $0x100] sm:$0xf]
      %v529 = vld [vmem:[%s426 + $0x104] sm:$0xf]
      %v530 = vld [vmem:[%s426 + $0x108] sm:$0xf]
      %v531 = vld [vmem:[%s426 + $0x10c] sm:$0xf]
      %v532 = vld [vmem:[%s426 + $0x110] sm:$0xf]
      %v533 = vld [vmem:[%s426 + $0x114] sm:$0xf]
      %v534 = vld [vmem:[%s426 + $0x118] sm:$0xf]
      %v535 = vld [vmem:[%s426 + $0x11c] sm:$0xf]
      %v536 = vld [vmem:[%s426 + $0x120] sm:$0xf]
      %v537 = vld [vmem:[%s426 + $0x124] sm:$0xf]
      %v538 = vld [vmem:[%s426 + $0x128] sm:$0xf]
      %v539 = vld [vmem:[%s426 + $0x12c] sm:$0xf]
      %v540 = vld [vmem:[%s426 + $0x130] sm:$0xf]
      %v541 = vld [vmem:[%s426 + $0x134] sm:$0xf]
      %v542 = vld [vmem:[%s426 + $0x138] sm:$0xf]
      %v543 = vld [vmem:[%s426 + $0x13c] sm:$0xf]
      %v544 = vld [vmem:[%s426 + $0x140] sm:$0xf]
      %v545 = vld [vmem:[%s426 + $0x144] sm:$0xf]
      %v546 = vld [vmem:[%s426 + $0x148] sm:$0xf]
      %v547 = vld [vmem:[%s426 + $0x14c] sm:$0xf]
      %v548 = vld [vmem:[%s426 + $0x150] sm:$0xf]
      %v549 = vld [vmem:[%s426 + $0x154] sm:$0xf]
      %v550 = vld [vmem:[%s426 + $0x158] sm:$0xf]
      %v551 = vld [vmem:[%s426 + $0x15c] sm:$0xf]
      %v552 = vld [vmem:[%s426 + $0x160] sm:$0xf]
      %v553 = vld [vmem:[%s426 + $0x164] sm:$0xf]
      %v554 = vld [vmem:[%s426 + $0x168] sm:$0xf]
      %v555 = vld [vmem:[%s426 + $0x16c] sm:$0xf]
      %v556 = vld [vmem:[%s426 + $0x170] sm:$0xf]
      %v557 = vld [vmem:[%s426 + $0x174] sm:$0xf]
      %v558 = vld [vmem:[%s426 + $0x178] sm:$0xf]
      %v559 = vld [vmem:[%s426 + $0x17c] sm:$0xf]
      %v560 = vld [vmem:[%s426 + $0x180] sm:$0xf]
      %v561 = vld [vmem:[%s426 + $0x184] sm:$0xf]
      %v562 = vld [vmem:[%s426 + $0x188] sm:$0xf]
      %v563 = vld [vmem:[%s426 + $0x18c] sm:$0xf]
      %v564 = vld [vmem:[%s426 + $0x190] sm:$0xf]
      %v565 = vld [vmem:[%s426 + $0x194] sm:$0xf]
      %v566 = vld [vmem:[%s426 + $0x198] sm:$0xf]
      %v567 = vld [vmem:[%s426 + $0x19c] sm:$0xf]
      %v568 = vld [vmem:[%s426 + $0x1a0] sm:$0xf]
      %v569 = vld [vmem:[%s426 + $0x1a4] sm:$0xf]
      %v570 = vld [vmem:[%s426 + $0x1a8] sm:$0xf]
      %v571 = vld [vmem:[%s426 + $0x1ac] sm:$0xf]
      %v572 = vld [vmem:[%s426 + $0x1b0] sm:$0xf]
      %v573 = vld [vmem:[%s426 + $0x1b4] sm:$0xf]
      %v574 = vld [vmem:[%s426 + $0x1b8] sm:$0xf]
      %v575 = vld [vmem:[%s426 + $0x1bc] sm:$0xf]
      %v576 = vld [vmem:[%s426 + $0x1c0] sm:$0xf]
      %v577 = vld [vmem:[%s426 + $0x1c4] sm:$0xf]
      %v578 = vld [vmem:[%s426 + $0x1c8] sm:$0xf]
      %v579 = vld [vmem:[%s426 + $0x1cc] sm:$0xf]
      %v580 = vld [vmem:[%s426 + $0x1d0] sm:$0xf]
      %v581 = vld [vmem:[%s426 + $0x1d4] sm:$0xf]
      %v582 = vld [vmem:[%s426 + $0x1d8] sm:$0xf]
      %v583 = vld [vmem:[%s426 + $0x1dc] sm:$0xf]
      %v584 = vld [vmem:[%s426 + $0x1e0] sm:$0xf]
      %v585 = vld [vmem:[%s426 + $0x1e4] sm:$0xf]
      %v586 = vld [vmem:[%s426 + $0x1e8] sm:$0xf]
      %v587 = vld [vmem:[%s426 + $0x1ec] sm:$0xf]
      %v588 = vld [vmem:[%s426 + $0x1f0] sm:$0xf]
      %v589 = vld [vmem:[%s426 + $0x1f4] sm:$0xf]
      %v590 = vld [vmem:[%s426 + $0x1f8] sm:$0xf]
      %v591 = vld [vmem:[%s426 + $0x1fc] sm:$0xf]
      %v592 = vld [vmem:[%s2] sm:$0xff]
      %v593 = vld [vmem:[%s2 + $0x8] sm:$0xff]
      %v594 = vld [vmem:[%s2 + $0x10] sm:$0xff]
      %v595 = vld [vmem:[%s2 + $0x18] sm:$0xf]
      %597 = vset.pattern.permute.xlu0 0
      %598 = vperm.xlu0 %597, %v592
      %v599 = vpop.permute.xlu0 %598
      %602 = vset.pattern.permute.xlu0 0
      %603 = vperm.xlu0 %602, %v593
      %v604 = vpop.permute.xlu0 %603
      %607 = vset.pattern.permute.xlu0 0
      %608 = vperm.xlu0 %607, %v594
      %v609 = vpop.permute.xlu0 %608
      %612 = vset.pattern.permute.xlu0 0
      %613 = vperm.xlu0 %612, %v595
      %v614 = vpop.permute.xlu0 %613
      %v632 = vunpack.c.l.b16 %v448
      %v633 = vunpack.c.h.b16 %v448
      %v634 = vunpack.c.l.b16 %v449
      %v635 = vunpack.c.h.b16 %v449
      %v636 = vunpack.c.l.b16 %v450
      %v637 = vunpack.c.h.b16 %v450
      %v638 = vunpack.c.l.b16 %v451
      %v639 = vunpack.c.h.b16 %v451
      %v640 = vunpack.c.l.b16 %v452
      %v641 = vunpack.c.h.b16 %v452
      %v642 = vunpack.c.l.b16 %v453
      %v643 = vunpack.c.h.b16 %v453
      %v644 = vunpack.c.l.b16 %v454
      %v645 = vunpack.c.h.b16 %v454
      %v646 = vunpack.c.l.b16 %v455
      %v647 = vunpack.c.h.b16 %v455
      %v648 = vunpack.c.l.b16 %v456
      %v649 = vunpack.c.h.b16 %v456
      %v650 = vunpack.c.l.b16 %v457
      %v651 = vunpack.c.h.b16 %v457
      %v652 = vunpack.c.l.b16 %v458
      %v653 = vunpack.c.h.b16 %v458
      %v654 = vunpack.c.l.b16 %v459
      %v655 = vunpack.c.h.b16 %v459
      %v656 = vunpack.c.l.b16 %v460
      %v657 = vunpack.c.h.b16 %v460
      %v658 = vunpack.c.l.b16 %v461
      %v659 = vunpack.c.h.b16 %v461
      %v660 = vunpack.c.l.b16 %v462
      %v661 = vunpack.c.h.b16 %v462
      %v662 = vunpack.c.l.b16 %v463
      %v663 = vunpack.c.h.b16 %v463
      %v664 = vpack.c.b16 %v640, %v632
      %v665 = vpack.c.b16 %v641, %v633
      %v666 = vpack.c.b16 %v642, %v634
      %v667 = vpack.c.b16 %v643, %v635
      %v668 = vpack.c.b16 %v644, %v636
      %v669 = vpack.c.b16 %v645, %v637
      %v670 = vpack.c.b16 %v646, %v638
      %v671 = vpack.c.b16 %v647, %v639
      %v672 = vpack.c.b16 %v656, %v648
      %v673 = vpack.c.b16 %v657, %v649
      %v674 = vpack.c.b16 %v658, %v650
      %v675 = vpack.c.b16 %v659, %v651
      %v676 = vpack.c.b16 %v660, %v652
      %v677 = vpack.c.b16 %v661, %v653
      %v678 = vpack.c.b16 %v662, %v654
      %v679 = vpack.c.b16 %v663, %v655
      %v824 = vunpack.c.l.b16 %v464
      %v825 = vunpack.c.l.b16 %v465
      %v826 = vunpack.c.l.b16 %v466
      %v827 = vunpack.c.l.b16 %v467
      %v828 = vunpack.c.l.b16 %v468
      %v829 = vunpack.c.l.b16 %v469
      %v830 = vunpack.c.l.b16 %v470
      %v831 = vunpack.c.l.b16 %v471
      %v832 = vunpack.c.l.b16 %v472
      %v833 = vunpack.c.l.b16 %v473
      %v834 = vunpack.c.l.b16 %v474
      %v835 = vunpack.c.l.b16 %v475
      %v836 = vunpack.c.l.b16 %v476
      %v837 = vunpack.c.l.b16 %v477
      %v838 = vunpack.c.l.b16 %v478
      %v839 = vunpack.c.l.b16 %v479
      %v840 = vunpack.c.l.b16 %v480
      %v841 = vunpack.c.l.b16 %v481
      %v842 = vunpack.c.l.b16 %v482
      %v843 = vunpack.c.l.b16 %v483
      %v844 = vunpack.c.l.b16 %v484
      %v845 = vunpack.c.l.b16 %v485
      %v846 = vunpack.c.l.b16 %v486
      %v847 = vunpack.c.l.b16 %v487
      %v848 = vunpack.c.l.b16 %v488
      %v849 = vunpack.c.l.b16 %v489
      %v850 = vunpack.c.l.b16 %v490
      %v851 = vunpack.c.l.b16 %v491
      %v852 = vunpack.c.l.b16 %v492
      %v853 = vunpack.c.l.b16 %v493
      %v854 = vunpack.c.l.b16 %v494
      %v855 = vunpack.c.l.b16 %v495
      %v856 = vunpack.c.l.b16 %v496
      %v857 = vunpack.c.l.b16 %v497
      %v858 = vunpack.c.l.b16 %v498
      %v859 = vunpack.c.l.b16 %v499
      %v860 = vunpack.c.l.b16 %v500
      %v861 = vunpack.c.l.b16 %v501
      %v862 = vunpack.c.l.b16 %v502
      %v863 = vunpack.c.l.b16 %v503
      %v864 = vunpack.c.l.b16 %v504
      %v865 = vunpack.c.l.b16 %v505
      %v866 = vunpack.c.l.b16 %v506
      %v867 = vunpack.c.l.b16 %v507
      %v868 = vunpack.c.l.b16 %v508
      %v869 = vunpack.c.l.b16 %v509
      %v870 = vunpack.c.l.b16 %v510
      %v871 = vunpack.c.l.b16 %v511
      %v872 = vunpack.c.l.b16 %v512
      %v873 = vunpack.c.l.b16 %v513
      %v874 = vunpack.c.l.b16 %v514
      %v875 = vunpack.c.l.b16 %v515
      %v876 = vunpack.c.l.b16 %v516
      %v877 = vunpack.c.l.b16 %v517
      %v878 = vunpack.c.l.b16 %v518
      %v879 = vunpack.c.l.b16 %v519
      %v880 = vunpack.c.l.b16 %v520
      %v881 = vunpack.c.l.b16 %v521
      %v882 = vunpack.c.l.b16 %v522
      %v883 = vunpack.c.l.b16 %v523
      %v884 = vunpack.c.l.b16 %v524
      %v885 = vunpack.c.l.b16 %v525
      %v886 = vunpack.c.l.b16 %v526
      %v887 = vunpack.c.l.b16 %v527
      %v888 = vunpack.c.l.b16 %v528
      %v889 = vunpack.c.l.b16 %v529
      %v890 = vunpack.c.l.b16 %v530
      %v891 = vunpack.c.l.b16 %v531
      %v892 = vunpack.c.l.b16 %v532
      %v893 = vunpack.c.l.b16 %v533
      %v894 = vunpack.c.l.b16 %v534
      %v895 = vunpack.c.l.b16 %v535
      %v896 = vunpack.c.l.b16 %v536
      %v897 = vunpack.c.l.b16 %v537
      %v898 = vunpack.c.l.b16 %v538
      %v899 = vunpack.c.l.b16 %v539
      %v900 = vunpack.c.l.b16 %v540
      %v901 = vunpack.c.l.b16 %v541
      %v902 = vunpack.c.l.b16 %v542
      %v903 = vunpack.c.l.b16 %v543
      %v904 = vunpack.c.l.b16 %v544
      %v905 = vunpack.c.l.b16 %v545
      %v906 = vunpack.c.l.b16 %v546
      %v907 = vunpack.c.l.b16 %v547
      %v908 = vunpack.c.l.b16 %v548
      %v909 = vunpack.c.l.b16 %v549
      %v910 = vunpack.c.l.b16 %v550
      %v911 = vunpack.c.l.b16 %v551
      %v912 = vunpack.c.l.b16 %v552
      %v913 = vunpack.c.l.b16 %v553
      %v914 = vunpack.c.l.b16 %v554
      %v915 = vunpack.c.l.b16 %v555
      %v916 = vunpack.c.l.b16 %v556
      %v917 = vunpack.c.l.b16 %v557
      %v918 = vunpack.c.l.b16 %v558
      %v919 = vunpack.c.l.b16 %v559
      %v920 = vunpack.c.l.b16 %v560
      %v921 = vunpack.c.l.b16 %v561
      %v922 = vunpack.c.l.b16 %v562
      %v923 = vunpack.c.l.b16 %v563
      %v924 = vunpack.c.l.b16 %v564
      %v925 = vunpack.c.l.b16 %v565
      %v926 = vunpack.c.l.b16 %v566
      %v927 = vunpack.c.l.b16 %v567
      %v928 = vunpack.c.l.b16 %v568
      %v929 = vunpack.c.l.b16 %v569
      %v930 = vunpack.c.l.b16 %v570
      %v931 = vunpack.c.l.b16 %v571
      %v932 = vunpack.c.l.b16 %v572
      %v933 = vunpack.c.l.b16 %v573
      %v934 = vunpack.c.l.b16 %v574
      %v935 = vunpack.c.l.b16 %v575
      %v936 = vunpack.c.l.b16 %v576
      %v937 = vunpack.c.l.b16 %v577
      %v938 = vunpack.c.l.b16 %v578
      %v939 = vunpack.c.l.b16 %v579
      %v940 = vunpack.c.l.b16 %v580
      %v941 = vunpack.c.l.b16 %v581
      %v942 = vunpack.c.l.b16 %v582
      %v943 = vunpack.c.l.b16 %v583
      %v944 = vunpack.c.l.b16 %v584
      %v945 = vunpack.c.l.b16 %v585
      %v946 = vunpack.c.l.b16 %v586
      %v947 = vunpack.c.l.b16 %v587
      %v948 = vunpack.c.l.b16 %v588
      %v949 = vunpack.c.l.b16 %v589
      %v950 = vunpack.c.l.b16 %v590
      %v951 = vunpack.c.l.b16 %v591
      %v952 = vpack.c.b16 %v825, %v824
      %v953 = vpack.c.b16 %v827, %v826
      %v954 = vpack.c.b16 %v829, %v828
      %v955 = vpack.c.b16 %v831, %v830
      %v956 = vpack.c.b16 %v833, %v832
      %v957 = vpack.c.b16 %v835, %v834
      %v958 = vpack.c.b16 %v837, %v836
      %v959 = vpack.c.b16 %v839, %v838
      %v960 = vpack.c.b16 %v841, %v840
      %v961 = vpack.c.b16 %v843, %v842
      %v962 = vpack.c.b16 %v845, %v844
      %v963 = vpack.c.b16 %v847, %v846
      %v964 = vpack.c.b16 %v849, %v848
      %v965 = vpack.c.b16 %v851, %v850
      %v966 = vpack.c.b16 %v853, %v852
      %v967 = vpack.c.b16 %v855, %v854
      %v968 = vpack.c.b16 %v857, %v856
      %v969 = vpack.c.b16 %v859, %v858
      %v970 = vpack.c.b16 %v861, %v860
      %v971 = vpack.c.b16 %v863, %v862
      %v972 = vpack.c.b16 %v865, %v864
      %v973 = vpack.c.b16 %v867, %v866
      %v974 = vpack.c.b16 %v869, %v868
      %v975 = vpack.c.b16 %v871, %v870
      %v976 = vpack.c.b16 %v873, %v872
      %v977 = vpack.c.b16 %v875, %v874
      %v978 = vpack.c.b16 %v877, %v876
      %v979 = vpack.c.b16 %v879, %v878
      %v980 = vpack.c.b16 %v881, %v880
      %v981 = vpack.c.b16 %v883, %v882
      %v982 = vpack.c.b16 %v885, %v884
      %v983 = vpack.c.b16 %v887, %v886
      %v984 = vpack.c.b16 %v889, %v888
      %v985 = vpack.c.b16 %v891, %v890
      %v986 = vpack.c.b16 %v893, %v892
      %v987 = vpack.c.b16 %v895, %v894
      %v988 = vpack.c.b16 %v897, %v896
      %v989 = vpack.c.b16 %v899, %v898
      %v990 = vpack.c.b16 %v901, %v900
      %v991 = vpack.c.b16 %v903, %v902
      %v992 = vpack.c.b16 %v905, %v904
      %v993 = vpack.c.b16 %v907, %v906
      %v994 = vpack.c.b16 %v909, %v908
      %v995 = vpack.c.b16 %v911, %v910
      %v996 = vpack.c.b16 %v913, %v912
      %v997 = vpack.c.b16 %v915, %v914
      %v998 = vpack.c.b16 %v917, %v916
      %v999 = vpack.c.b16 %v919, %v918
      %v1000 = vpack.c.b16 %v921, %v920
      %v1001 = vpack.c.b16 %v923, %v922
      %v1002 = vpack.c.b16 %v925, %v924
      %v1003 = vpack.c.b16 %v927, %v926
      %v1004 = vpack.c.b16 %v929, %v928
      %v1005 = vpack.c.b16 %v931, %v930
      %v1006 = vpack.c.b16 %v933, %v932
      %v1007 = vpack.c.b16 %v935, %v934
      %v1008 = vpack.c.b16 %v937, %v936
      %v1009 = vpack.c.b16 %v939, %v938
      %v1010 = vpack.c.b16 %v941, %v940
      %v1011 = vpack.c.b16 %v943, %v942
      %v1012 = vpack.c.b16 %v945, %v944
      %v1013 = vpack.c.b16 %v947, %v946
      %v1014 = vpack.c.b16 %v949, %v948
      %v1015 = vpack.c.b16 %v951, %v950
      %1080 = vmatpush.bf16.msra.mxu0 %v959
      %1081 = vmatpush.bf16.msra.mxu0 %v958
      %1082 = vmatpush.bf16.msra.mxu0 %v957
      %1083 = vmatpush.bf16.msra.mxu0 %v956
      %1084 = vmatpush.bf16.msra.mxu0 %v955
      %1085 = vmatpush.bf16.msra.mxu0 %v954
      %1086 = vmatpush.bf16.msra.mxu0 %v953
      %1087 = vmatpush.bf16.msra.mxu0 %v952
      %1088 = vmatmul.bf16.gmra.mxu0 %v664
      %v1089 = vpop.f32.mrf.mxu0
      %v1090 = vadd.f32 %v599, %v1089
      %v1091 = vpop.f32.mrf.mxu0
      %v1092 = vadd.f32 %v604, %v1091
      %1093 = vmatmul.bf16.gmra.mxu0 %v672
      %v1094 = vpop.f32.mrf.mxu0
      %v1095 = vadd.f32 %v609, %v1094
      %v1096 = vpop.f32.mrf.mxu0
      %v1097 = vadd.f32 %v614, %v1096
      %1098 = vdwg.mxu0
      %1099 = vmatpush.bf16.msra.mxu0 %v967
      %1100 = vmatpush.bf16.msra.mxu0 %v966
      %1101 = vmatpush.bf16.msra.mxu0 %v965
      %1102 = vmatpush.bf16.msra.mxu0 %v964
      %1103 = vmatpush.bf16.msra.mxu0 %v963
      %1104 = vmatpush.bf16.msra.mxu0 %v962
      %1105 = vmatpush.bf16.msra.mxu0 %v961
      %1106 = vmatpush.bf16.msra.mxu0 %v960
      %1107 = vmatmul.bf16.gmra.mxu0 %v665
      %v1108 = vpop.f32.mrf.mxu0
      %v1109 = vadd.f32 %v1090, %v1108
      %v1110 = vpop.f32.mrf.mxu0
      %v1111 = vadd.f32 %v1092, %v1110
      %1112 = vmatmul.bf16.gmra.mxu0 %v673
      %v1113 = vpop.f32.mrf.mxu0
      %v1114 = vadd.f32 %v1095, %v1113
      %v1115 = vpop.f32.mrf.mxu0
      %v1116 = vadd.f32 %v1097, %v1115
      %1117 = vdwg.mxu0
      %1118 = vmatpush.bf16.msra.mxu0 %v975
      %1119 = vmatpush.bf16.msra.mxu0 %v974
      %1120 = vmatpush.bf16.msra.mxu0 %v973
      %1121 = vmatpush.bf16.msra.mxu0 %v972
      %1122 = vmatpush.bf16.msra.mxu0 %v971
      %1123 = vmatpush.bf16.msra.mxu0 %v970
      %1124 = vmatpush.bf16.msra.mxu0 %v969
      %1125 = vmatpush.bf16.msra.mxu0 %v968
      %1126 = vmatmul.bf16.gmra.mxu0 %v666
      %v1127 = vpop.f32.mrf.mxu0
      %v1128 = vadd.f32 %v1109, %v1127
      %v1129 = vpop.f32.mrf.mxu0
      %v1130 = vadd.f32 %v1111, %v1129
      %1131 = vmatmul.bf16.gmra.mxu0 %v674
      %v1132 = vpop.f32.mrf.mxu0
      %v1133 = vadd.f32 %v1114, %v1132
      %v1134 = vpop.f32.mrf.mxu0
      %v1135 = vadd.f32 %v1116, %v1134
      %1136 = vdwg.mxu0
      %1137 = vmatpush.bf16.msra.mxu0 %v983
      %1138 = vmatpush.bf16.msra.mxu0 %v982
      %1139 = vmatpush.bf16.msra.mxu0 %v981
      %1140 = vmatpush.bf16.msra.mxu0 %v980
      %1141 = vmatpush.bf16.msra.mxu0 %v979
      %1142 = vmatpush.bf16.msra.mxu0 %v978
      %1143 = vmatpush.bf16.msra.mxu0 %v977
      %1144 = vmatpush.bf16.msra.mxu0 %v976
      %1145 = vmatmul.bf16.gmra.mxu0 %v667
      %v1146 = vpop.f32.mrf.mxu0
      %v1147 = vadd.f32 %v1128, %v1146
      %v1148 = vpop.f32.mrf.mxu0
      %v1149 = vadd.f32 %v1130, %v1148
      %1150 = vmatmul.bf16.gmra.mxu0 %v675
      %v1151 = vpop.f32.mrf.mxu0
      %v1152 = vadd.f32 %v1133, %v1151
      %v1153 = vpop.f32.mrf.mxu0
      %v1154 = vadd.f32 %v1135, %v1153
      %1155 = vdwg.mxu0
      %1156 = vmatpush.bf16.msra.mxu0 %v991
      %1157 = vmatpush.bf16.msra.mxu0 %v990
      %1158 = vmatpush.bf16.msra.mxu0 %v989
      %1159 = vmatpush.bf16.msra.mxu0 %v988
      %1160 = vmatpush.bf16.msra.mxu0 %v987
      %1161 = vmatpush.bf16.msra.mxu0 %v986
      %1162 = vmatpush.bf16.msra.mxu0 %v985
      %1163 = vmatpush.bf16.msra.mxu0 %v984
      %1164 = vmatmul.bf16.gmra.mxu0 %v668
      %v1165 = vpop.f32.mrf.mxu0
      %v1166 = vadd.f32 %v1147, %v1165
      %v1167 = vpop.f32.mrf.mxu0
      %v1168 = vadd.f32 %v1149, %v1167
      %1169 = vmatmul.bf16.gmra.mxu0 %v676
      %v1170 = vpop.f32.mrf.mxu0
      %v1171 = vadd.f32 %v1152, %v1170
      %v1172 = vpop.f32.mrf.mxu0
      %v1173 = vadd.f32 %v1154, %v1172
      %1174 = vdwg.mxu0
      %1175 = vmatpush.bf16.msra.mxu0 %v999
      %1176 = vmatpush.bf16.msra.mxu0 %v998
      %1177 = vmatpush.bf16.msra.mxu0 %v997
      %1178 = vmatpush.bf16.msra.mxu0 %v996
      %1179 = vmatpush.bf16.msra.mxu0 %v995
      %1180 = vmatpush.bf16.msra.mxu0 %v994
      %1181 = vmatpush.bf16.msra.mxu0 %v993
      %1182 = vmatpush.bf16.msra.mxu0 %v992
      %1183 = vmatmul.bf16.gmra.mxu0 %v669
      %v1184 = vpop.f32.mrf.mxu0
      %v1185 = vadd.f32 %v1166, %v1184
      %v1186 = vpop.f32.mrf.mxu0
      %v1187 = vadd.f32 %v1168, %v1186
      %1188 = vmatmul.bf16.gmra.mxu0 %v677
      %v1189 = vpop.f32.mrf.mxu0
      %v1190 = vadd.f32 %v1171, %v1189
      %v1191 = vpop.f32.mrf.mxu0
      %v1192 = vadd.f32 %v1173, %v1191
      %1193 = vdwg.mxu0
      %1194 = vmatpush.bf16.msra.mxu0 %v1007
      %1195 = vmatpush.bf16.msra.mxu0 %v1006
      %1196 = vmatpush.bf16.msra.mxu0 %v1005
      %1197 = vmatpush.bf16.msra.mxu0 %v1004
      %1198 = vmatpush.bf16.msra.mxu0 %v1003
      %1199 = vmatpush.bf16.msra.mxu0 %v1002
      %1200 = vmatpush.bf16.msra.mxu0 %v1001
      %1201 = vmatpush.bf16.msra.mxu0 %v1000
      %1202 = vmatmul.bf16.gmra.mxu0 %v670
      %v1203 = vpop.f32.mrf.mxu0
      %v1204 = vadd.f32 %v1185, %v1203
      %v1205 = vpop.f32.mrf.mxu0
      %v1206 = vadd.f32 %v1187, %v1205
      %1207 = vmatmul.bf16.gmra.mxu0 %v678
      %v1208 = vpop.f32.mrf.mxu0
      %v1209 = vadd.f32 %v1190, %v1208
      %v1210 = vpop.f32.mrf.mxu0
      %v1211 = vadd.f32 %v1192, %v1210
      %1212 = vdwg.mxu0
      %1213 = vmatpush.bf16.msra.mxu0 %v1015
      %1214 = vmatpush.bf16.msra.mxu0 %v1014
      %1215 = vmatpush.bf16.msra.mxu0 %v1013
      %1216 = vmatpush.bf16.msra.mxu0 %v1012
      %1217 = vmatpush.bf16.msra.mxu0 %v1011
      %1218 = vmatpush.bf16.msra.mxu0 %v1010
      %1219 = vmatpush.bf16.msra.mxu0 %v1009
      %1220 = vmatpush.bf16.msra.mxu0 %v1008
      %1221 = vmatmul.bf16.gmra.mxu0 %v671
      %v1222 = vpop.f32.mrf.mxu0
      %v1223 = vadd.f32 %v1204, %v1222
      %v1224 = vpop.f32.mrf.mxu0
      %v1225 = vadd.f32 %v1206, %v1224
      %1226 = vmatmul.bf16.gmra.mxu0 %v679
      %v1227 = vpop.f32.mrf.mxu0
      %v1228 = vadd.f32 %v1209, %v1227
      %v1229 = vpop.f32.mrf.mxu0
      %v1230 = vadd.f32 %v1211, %v1229
      %1231 = vdwg.mxu0
      %s1232 = smul.u32 %s28, 128
      %s1233 = sshra.s32 %s1232, 7
      %s1234 = sand.u32 %s1232, 127
      %s1235 = scalar_lea.vmem %s431, %s1233
      %1236 = vst [vmem:[%s1235] sm:$0xff] %v1223
      %1237 = vst [vmem:[%s1235 + $0x8] sm:$0xff] %v1225
      %1238 = vst [vmem:[%s1235 + $0x10] sm:$0xff] %v1228
      %1239 = vst [vmem:[%s1235 + $0x18] sm:$0xf] %v1230
      %p1240 = scmp.eq.s32.totalorder %s28, 0
      // Predicated region
      $region53: #{snet_forward.1} parent=51 // pred_check
        %p1241 = pneg %p1240
      $region54: #{snet_forward.1} parent=51 // pred_check_branch
        %1243 = sbr.rel (%p1241) target = $region56
      $region55: #{snet_forward.1} parent=51 // pred_region
        %v1244 = vld [vmem:[%s431] sm:$0xff]
        %v1245 = vld [vmem:[%s431 + $0x8] sm:$0xff]
        %v1246 = vld [vmem:[%s431 + $0x10] sm:$0xff]
        %v1247 = vld [vmem:[%s431 + $0x18] sm:$0xf]
        %v1248 = vpack.c.bf16 %v1245, %v1244
        %v1249 = vpack.c.bf16 %v1247, %v1246
        %v1250 = vld [vmem:[%s3] sm:$0xf]
        %v1251 = vld [vmem:[%s3 + $0x4] sm:$0xf]
        %v1252 = vld [vmem:[%s3 + $0x8] sm:$0xf]
        %v1253 = vld [vmem:[%s3 + $0xc] sm:$0xf]
        %v1254 = vld [vmem:[%s3 + $0x10] sm:$0xf]
        %v1255 = vld [vmem:[%s3 + $0x14] sm:$0xf]
        %v1256 = vld [vmem:[%s3 + $0x18] sm:$0xf]
        %v1257 = vld [vmem:[%s3 + $0x1c] sm:$0xf]
        %v1258 = vld [vmem:[%s3 + $0x20] sm:$0xf]
        %v1259 = vld [vmem:[%s3 + $0x24] sm:$0xf]
        %v1260 = vld [vmem:[%s3 + $0x28] sm:$0xf]
        %v1261 = vld [vmem:[%s3 + $0x2c] sm:$0xf]
        %v1262 = vld [vmem:[%s3 + $0x30] sm:$0xf]
        %v1263 = vld [vmem:[%s3 + $0x34] sm:$0xf]
        %v1264 = vld [vmem:[%s3 + $0x38] sm:$0xf]
        %v1265 = vld [vmem:[%s3 + $0x3c] sm:$0xf]
        %v1266 = vld [vmem:[%s3 + $0x40] sm:$0xf]
        %v1267 = vld [vmem:[%s3 + $0x44] sm:$0xf]
        %v1268 = vld [vmem:[%s3 + $0x48] sm:$0xf]
        %v1269 = vld [vmem:[%s3 + $0x4c] sm:$0xf]
        %v1270 = vld [vmem:[%s3 + $0x50] sm:$0xf]
        %v1271 = vld [vmem:[%s4] sm:$0xff]
        %v1272 = vld [vmem:[%s4 + $0x8] sm:$0xff]
        %v1273 = vld [vmem:[%s4 + $0x10] sm:$0xff]
        %v1274 = vld [vmem:[%s4 + $0x18] sm:$0xff]
        %v1275 = vld [vmem:[%s4 + $0x20] sm:$0xff]
        %v1276 = vld [vmem:[%s4 + $0x28] sm:$0xff]
        %v1277 = vld [vmem:[%s4 + $0x30] sm:$0xff]
        %v1278 = vld [vmem:[%s4 + $0x38] sm:$0xff]
        %v1279 = vld [vmem:[%s4 + $0x40] sm:$0xff]
        %v1280 = vld [vmem:[%s4 + $0x48] sm:$0xff]
        %v1281 = vld [vmem:[%s4 + $0x50] sm:$0xff]
        %v1282 = vld [vmem:[%s4 + $0x58] sm:$0xff]
        %v1283 = vld [vmem:[%s4 + $0x60] sm:$0xff]
        %v1284 = vld [vmem:[%s4 + $0x68] sm:$0xff]
        %v1285 = vld [vmem:[%s4 + $0x70] sm:$0xff]
        %v1286 = vld [vmem:[%s4 + $0x78] sm:$0xff]
        %v1287 = vld [vmem:[%s4 + $0x80] sm:$0xff]
        %v1288 = vld [vmem:[%s4 + $0x88] sm:$0xff]
        %v1289 = vld [vmem:[%s4 + $0x90] sm:$0xff]
        %v1290 = vld [vmem:[%s4 + $0x98] sm:$0xff]
        %v1291 = vld [vmem:[%s4 + $0xa0] sm:$0xff]
        %1293 = vset.pattern.permute.xlu0 0
        %1294 = vperm.xlu0 %1293, %v1271
        %v1295 = vpop.permute.xlu0 %1294
        %1298 = vset.pattern.permute.xlu0 0
        %1299 = vperm.xlu0 %1298, %v1272
        %v1300 = vpop.permute.xlu0 %1299
        %1303 = vset.pattern.permute.xlu0 0
        %1304 = vperm.xlu0 %1303, %v1273
        %v1305 = vpop.permute.xlu0 %1304
        %1308 = vset.pattern.permute.xlu0 0
        %1309 = vperm.xlu0 %1308, %v1274
        %v1310 = vpop.permute.xlu0 %1309
        %1313 = vset.pattern.permute.xlu0 0
        %1314 = vperm.xlu0 %1313, %v1275
        %v1315 = vpop.permute.xlu0 %1314
        %1318 = vset.pattern.permute.xlu0 0
        %1319 = vperm.xlu0 %1318, %v1276
        %v1320 = vpop.permute.xlu0 %1319
        %1323 = vset.pattern.permute.xlu0 0
        %1324 = vperm.xlu0 %1323, %v1277
        %v1325 = vpop.permute.xlu0 %1324
        %1328 = vset.pattern.permute.xlu0 0
        %1329 = vperm.xlu0 %1328, %v1278
        %v1330 = vpop.permute.xlu0 %1329
        %1333 = vset.pattern.permute.xlu0 0
        %1334 = vperm.xlu0 %1333, %v1279
        %v1335 = vpop.permute.xlu0 %1334
        %1338 = vset.pattern.permute.xlu0 0
        %1339 = vperm.xlu0 %1338, %v1280
        %v1340 = vpop.permute.xlu0 %1339
        %1343 = vset.pattern.permute.xlu0 0
        %1344 = vperm.xlu0 %1343, %v1281
        %v1345 = vpop.permute.xlu0 %1344
        %1348 = vset.pattern.permute.xlu0 0
        %1349 = vperm.xlu0 %1348, %v1282
        %v1350 = vpop.permute.xlu0 %1349
        %1353 = vset.pattern.permute.xlu0 0
        %1354 = vperm.xlu0 %1353, %v1283
        %v1355 = vpop.permute.xlu0 %1354
        %1358 = vset.pattern.permute.xlu0 0
        %1359 = vperm.xlu0 %1358, %v1284
        %v1360 = vpop.permute.xlu0 %1359
        %1363 = vset.pattern.permute.xlu0 0
        %1364 = vperm.xlu0 %1363, %v1285
        %v1365 = vpop.permute.xlu0 %1364
        %1368 = vset.pattern.permute.xlu0 0
        %1369 = vperm.xlu0 %1368, %v1286
        %v1370 = vpop.permute.xlu0 %1369
        %1373 = vset.pattern.permute.xlu0 0
        %1374 = vperm.xlu0 %1373, %v1287
        %v1375 = vpop.permute.xlu0 %1374
        %1378 = vset.pattern.permute.xlu0 0
        %1379 = vperm.xlu0 %1378, %v1288
        %v1380 = vpop.permute.xlu0 %1379
        %1383 = vset.pattern.permute.xlu0 0
        %1384 = vperm.xlu0 %1383, %v1289
        %v1385 = vpop.permute.xlu0 %1384
        %1388 = vset.pattern.permute.xlu0 0
        %1389 = vperm.xlu0 %1388, %v1290
        %v1390 = vpop.permute.xlu0 %1389
        %1393 = vset.pattern.permute.xlu0 0
        %1394 = vperm.xlu0 %1393, %v1291
        %v1395 = vpop.permute.xlu0 %1394
        %v1418 = vunpack.c.l.b16 %v1250
        %v1419 = vunpack.c.l.b16 %v1251
        %v1420 = vunpack.c.l.b16 %v1252
        %v1421 = vunpack.c.l.b16 %v1253
        %v1422 = vunpack.c.l.b16 %v1254
        %v1423 = vunpack.c.l.b16 %v1255
        %v1424 = vunpack.c.l.b16 %v1256
        %v1425 = vunpack.c.l.b16 %v1257
        %v1426 = vunpack.c.l.b16 %v1258
        %v1427 = vunpack.c.l.b16 %v1259
        %v1428 = vunpack.c.l.b16 %v1260
        %v1429 = vunpack.c.l.b16 %v1261
        %v1430 = vunpack.c.l.b16 %v1262
        %v1431 = vunpack.c.l.b16 %v1263
        %v1432 = vunpack.c.l.b16 %v1264
        %v1433 = vunpack.c.l.b16 %v1265
        %v1434 = vunpack.c.l.b16 %v1266
        %v1435 = vunpack.c.l.b16 %v1267
        %v1436 = vunpack.c.l.b16 %v1268
        %v1437 = vunpack.c.l.b16 %v1269
        %v1438 = vunpack.c.l.b16 %v1270
        %v1439 = vpack.c.b16 %v1419, %v1418
        %v1440 = vpack.c.b16 %v1421, %v1420
        %v1441 = vpack.c.b16 %v1423, %v1422
        %v1442 = vpack.c.b16 %v1425, %v1424
        %v1443 = vpack.c.b16 %v1427, %v1426
        %v1444 = vpack.c.b16 %v1429, %v1428
        %v1445 = vpack.c.b16 %v1431, %v1430
        %v1446 = vpack.c.b16 %v1433, %v1432
        %v1447 = vpack.c.b16 %v1435, %v1434
        %v1448 = vpack.c.b16 %v1437, %v1436
        %v1449 = vpack.c.b16 %v1438, %v1438
        %vm1450 = vcmask 228352
        %v1452 = vsel %vm1450, %v1439, 0
        %v1455 = vsel %vm1450, %v1440, 0
        %v1458 = vsel %vm1450, %v1441, 0
        %v1461 = vsel %vm1450, %v1442, 0
        %v1464 = vsel %vm1450, %v1443, 0
        %v1467 = vsel %vm1450, %v1444, 0
        %v1470 = vsel %vm1450, %v1445, 0
        %v1473 = vsel %vm1450, %v1446, 0
        %v1476 = vsel %vm1450, %v1447, 0
        %v1479 = vsel %vm1450, %v1448, 0
        %v1482 = vsel %vm1450, %v1449, 0
        %vm1484 = vcmask 1045504
        %v1486 = vsel %vm1484, %v1249, 0
        %1488 = vmatpush.bf16.msra.mxu0 0
        %1489 = vmatpush.bf16.msra.mxu0 0
        %1490 = vmatpush.bf16.msra.mxu0 0
        %1491 = vmatpush.bf16.msra.mxu0 0
        %1492 = vmatpush.bf16.msra.mxu0 0
        %1493 = vmatpush.bf16.msra.mxu0 0
        %1494 = vmatpush.bf16.msra.mxu0 %v1486
        %1495 = vmatpush.bf16.msra.mxu0 %v1248
        %1496 = vmatmul.bf16.gmra.mxu0 %v1452
        %v1497 = vpop.f32.mrf.mxu0
        %v1498 = vadd.f32 %v1295, %v1497
        %v1499 = vpop.f32.mrf.mxu0
        %v1500 = vadd.f32 %v1300, %v1499
        %1501 = vmatmul.bf16.gmra.mxu0 %v1455
        %v1502 = vpop.f32.mrf.mxu0
        %v1503 = vadd.f32 %v1305, %v1502
        %v1504 = vpop.f32.mrf.mxu0
        %v1505 = vadd.f32 %v1310, %v1504
        %1506 = vmatmul.bf16.gmra.mxu0 %v1458
        %v1507 = vpop.f32.mrf.mxu0
        %v1508 = vadd.f32 %v1315, %v1507
        %v1509 = vpop.f32.mrf.mxu0
        %v1510 = vadd.f32 %v1320, %v1509
        %1511 = vmatmul.bf16.gmra.mxu0 %v1461
        %v1512 = vpop.f32.mrf.mxu0
        %v1513 = vadd.f32 %v1325, %v1512
        %v1514 = vpop.f32.mrf.mxu0
        %v1515 = vadd.f32 %v1330, %v1514
        %1516 = vmatmul.bf16.gmra.mxu0 %v1464
        %v1517 = vpop.f32.mrf.mxu0
        %v1518 = vadd.f32 %v1335, %v1517
        %v1519 = vpop.f32.mrf.mxu0
        %v1520 = vadd.f32 %v1340, %v1519
        %1521 = vmatmul.bf16.gmra.mxu0 %v1467
        %v1522 = vpop.f32.mrf.mxu0
        %v1523 = vadd.f32 %v1345, %v1522
        %v1524 = vpop.f32.mrf.mxu0
        %v1525 = vadd.f32 %v1350, %v1524
        %1526 = vmatmul.bf16.gmra.mxu0 %v1470
        %v1527 = vpop.f32.mrf.mxu0
        %v1528 = vadd.f32 %v1355, %v1527
        %v1529 = vpop.f32.mrf.mxu0
        %v1530 = vadd.f32 %v1360, %v1529
        %1531 = vmatmul.bf16.gmra.mxu0 %v1473
        %v1532 = vpop.f32.mrf.mxu0
        %v1533 = vadd.f32 %v1365, %v1532
        %v1534 = vpop.f32.mrf.mxu0
        %v1535 = vadd.f32 %v1370, %v1534
        %1536 = vmatmul.bf16.gmra.mxu0 %v1476
        %v1537 = vpop.f32.mrf.mxu0
        %v1538 = vadd.f32 %v1375, %v1537
        %v1539 = vpop.f32.mrf.mxu0
        %v1540 = vadd.f32 %v1380, %v1539
        %1541 = vmatmul.bf16.gmra.mxu0 %v1479
        %v1542 = vpop.f32.mrf.mxu0
        %v1543 = vadd.f32 %v1385, %v1542
        %v1544 = vpop.f32.mrf.mxu0
        %v1545 = vadd.f32 %v1390, %v1544
        %1546 = vmatmul.bf16.gmra.mxu0 %v1482
        %v1547 = vpop.f32.mrf.mxu0
        %v1548 = vadd.f32 %v1395, %v1547
        %v1549 = vpop.f32.mrf.mxu0
        %1550 = vdwg.mxu0
        %v1551 = vpack.c.bf16 %v1500, %v1498
        %v1552 = vpack.c.bf16 %v1505, %v1503
        %1553 = vxpose.xlu0.c.b16.start [1/8] %v1552, 128
        %1554 = vxpose.xlu0.c.b16.cont [2/8] 0, 128
        %1555 = vxpose.xlu0.c.b16.cont [3/8] 0, 128
        %1556 = vxpose.xlu0.c.b16.cont [4/8] 0, 128
        %1557 = vxpose.xlu0.c.b16.cont [5/8] 0, 128
        %1558 = vxpose.xlu0.c.b16.cont [6/8] 0, 128
        %1559 = vxpose.xlu0.c.b16.cont [7/8] 0, 128
        %1560 = vxpose.xlu0.c.b16.end [8/8] 0, 128
        %v1561 = vpop.trf.xlu0
        %v1562 = vpop.trf.xlu0
        %v1563 = vpop.trf.xlu0
        %v1564 = vpop.trf.xlu0
        %v1565 = vpop.trf.xlu0
        %v1566 = vpop.trf.xlu0
        %v1567 = vpop.trf.xlu0
        %v1568 = vpop.trf.xlu0
        %vm1569 = vcmask 130048
        %v1571 = vsel %vm1569, %v1561, 0
        %v1574 = vsel %vm1569, %v1562, 0
        %v1577 = vsel %vm1569, %v1563, 0
        %v1580 = vsel %vm1569, %v1564, 0
        %v1583 = vsel %vm1569, %v1565, 0
        %v1586 = vsel %vm1569, %v1566, 0
        %v1589 = vsel %vm1569, %v1567, 0
        %v1592 = vsel %vm1569, %v1568, 0
        %1594 = vmatpush.bf16.msra.mxu0 0
        %1595 = vmatpush.bf16.msra.mxu0 0
        %1596 = vmatpush.bf16.msra.mxu0 0
        %1597 = vmatpush.bf16.msra.mxu0 0
        %1598 = vmatpush.bf16.msra.mxu0 0
        %1599 = vmatpush.bf16.msra.mxu0 0
        %1600 = vmatpush.bf16.msra.mxu0 0
        %1601 = vmatpush.bf16.msra.mxu0 %v1551
        %1602 = vmatmul.bf16.gmra.mxu0 %v1571
        %v1603 = vpop.f32.mrf.mxu0
        %v1604 = vadd.f32 0.0, %v1603
        %v1605 = vpop.f32.mrf.mxu0
        %v1606 = vadd.f32 0.0, %v1605
        %1607 = vmatmul.bf16.gmra.mxu0 %v1574
        %v1608 = vpop.f32.mrf.mxu0
        %v1609 = vadd.f32 0.0, %v1608
        %v1610 = vpop.f32.mrf.mxu0
        %v1611 = vadd.f32 0.0, %v1610
        %1612 = vmatmul.bf16.gmra.mxu0 %v1577
        %v1613 = vpop.f32.mrf.mxu0
        %v1614 = vadd.f32 0.0, %v1613
        %v1615 = vpop.f32.mrf.mxu0
        %v1616 = vadd.f32 0.0, %v1615
        %1617 = vmatmul.bf16.gmra.mxu0 %v1580
        %v1618 = vpop.f32.mrf.mxu0
        %v1619 = vadd.f32 0.0, %v1618
        %v1620 = vpop.f32.mrf.mxu0
        %v1621 = vadd.f32 0.0, %v1620
        %1622 = vmatmul.bf16.gmra.mxu0 %v1583
        %v1623 = vpop.f32.mrf.mxu0
        %v1624 = vadd.f32 0.0, %v1623
        %v1625 = vpop.f32.mrf.mxu0
        %v1626 = vadd.f32 0.0, %v1625
        %1627 = vmatmul.bf16.gmra.mxu0 %v1586
        %v1628 = vpop.f32.mrf.mxu0
        %v1629 = vadd.f32 0.0, %v1628
        %v1630 = vpop.f32.mrf.mxu0
        %v1631 = vadd.f32 0.0, %v1630
        %1632 = vmatmul.bf16.gmra.mxu0 %v1589
        %v1633 = vpop.f32.mrf.mxu0
        %v1634 = vadd.f32 0.0, %v1633
        %v1635 = vpop.f32.mrf.mxu0
        %v1636 = vadd.f32 0.0, %v1635
        %1637 = vmatmul.bf16.gmra.mxu0 %v1592
        %v1638 = vpop.f32.mrf.mxu0
        %v1639 = vadd.f32 0.0, %v1638
        %v1640 = vpop.f32.mrf.mxu0
        %v1641 = vadd.f32 0.0, %v1640
        %1642 = vdwg.mxu0
        %v1643 = vlaneseq
        %v1644 = vand.u32 %v1643, 127
        %vm1645 = vcmp.lt.s32.totalorder %v1644, 64
        %v1646 = vsel %vm1645, 1, 0
        %vm1647 = vcmp.eq.s32.totalorder %v1646, 1
        %v1648 = vsel %vm1647, %v1604, -1e+30
        %v1649 = vsel %vm1647, %v1606, -1e+30
        %v1650 = vsel %vm1647, %v1609, -1e+30
        %v1651 = vsel %vm1647, %v1611, -1e+30
        %v1652 = vsel %vm1647, %v1614, -1e+30
        %v1653 = vsel %vm1647, %v1616, -1e+30
        %v1654 = vsel %vm1647, %v1619, -1e+30
        %v1655 = vsel %vm1647, %v1621, -1e+30
        %v1656 = vsel %vm1647, %v1624, -1e+30
        %v1657 = vsel %vm1647, %v1626, -1e+30
        %v1658 = vsel %vm1647, %v1629, -1e+30
        %v1659 = vsel %vm1647, %v1631, -1e+30
        %v1660 = vsel %vm1647, %v1634, -1e+30
        %v1661 = vsel %vm1647, %v1636, -1e+30
        %v1662 = vsel %vm1647, %v1639, -1e+30
        %v1663 = vsel %vm1647, %v1641, -1e+30
        %1664 = vmax.xlane.f32.xlu0 %v1648
        %v1665 = vpop.xlane.xlu0 %1664
        %1666 = vmax.xlane.f32.xlu0 %v1649
        %v1667 = vpop.xlane.xlu0 %1666
        %1668 = vmax.xlane.f32.xlu0 %v1650
        %v1669 = vpop.xlane.xlu0 %1668
        %1670 = vmax.xlane.f32.xlu0 %v1651
        %v1671 = vpop.xlane.xlu0 %1670
        %1672 = vmax.xlane.f32.xlu0 %v1652
        %v1673 = vpop.xlane.xlu0 %1672
        %1674 = vmax.xlane.f32.xlu0 %v1653
        %v1675 = vpop.xlane.xlu0 %1674
        %1676 = vmax.xlane.f32.xlu0 %v1654
        %v1677 = vpop.xlane.xlu0 %1676
        %1678 = vmax.xlane.f32.xlu0 %v1655
        %v1679 = vpop.xlane.xlu0 %1678
        %1680 = vmax.xlane.f32.xlu0 %v1656
        %v1681 = vpop.xlane.xlu0 %1680
        %1682 = vmax.xlane.f32.xlu0 %v1657
        %v1683 = vpop.xlane.xlu0 %1682
        %1684 = vmax.xlane.f32.xlu0 %v1658
        %v1685 = vpop.xlane.xlu0 %1684
        %1686 = vmax.xlane.f32.xlu0 %v1659
        %v1687 = vpop.xlane.xlu0 %1686
        %1688 = vmax.xlane.f32.xlu0 %v1660
        %v1689 = vpop.xlane.xlu0 %1688
        %1690 = vmax.xlane.f32.xlu0 %v1661
        %v1691 = vpop.xlane.xlu0 %1690
        %1692 = vmax.xlane.f32.xlu0 %v1662
        %v1693 = vpop.xlane.xlu0 %1692
        %1694 = vmax.xlane.f32.xlu0 %v1663
        %v1695 = vpop.xlane.xlu0 %1694
        %v1696 = vsub.f32 %v1648, %v1665
        %v1697 = vsub.f32 %v1649, %v1667
        %v1698 = vsub.f32 %v1650, %v1669
        %v1699 = vsub.f32 %v1651, %v1671
        %v1700 = vsub.f32 %v1652, %v1673
        %v1701 = vsub.f32 %v1653, %v1675
        %v1702 = vsub.f32 %v1654, %v1677
        %v1703 = vsub.f32 %v1655, %v1679
        %v1704 = vsub.f32 %v1656, %v1681
        %v1705 = vsub.f32 %v1657, %v1683
        %v1706 = vsub.f32 %v1658, %v1685
        %v1707 = vsub.f32 %v1659, %v1687
        %v1708 = vsub.f32 %v1660, %v1689
        %v1709 = vsub.f32 %v1661, %v1691
        %v1710 = vsub.f32 %v1662, %v1693
        %v1711 = vsub.f32 %v1663, %v1695
        %v1712 = vmul.f32 %v1696, 1.442695
        %v1713 = vpow.pop %v1712
        %v1714 = vmul.f32 %v1697, 1.442695
        %v1715 = vpow.pop %v1714
        %v1716 = vmul.f32 %v1698, 1.442695
        %v1717 = vpow.pop %v1716
        %v1718 = vmul.f32 %v1699, 1.442695
        %v1719 = vpow.pop %v1718
        %v1720 = vmul.f32 %v1700, 1.442695
        %v1721 = vpow.pop %v1720
        %v1722 = vmul.f32 %v1701, 1.442695
        %v1723 = vpow.pop %v1722
        %v1724 = vmul.f32 %v1702, 1.442695
        %v1725 = vpow.pop %v1724
        %v1726 = vmul.f32 %v1703, 1.442695
        %v1727 = vpow.pop %v1726
        %v1728 = vmul.f32 %v1704, 1.442695
        %v1729 = vpow.pop %v1728
        %v1730 = vmul.f32 %v1705, 1.442695
        %v1731 = vpow.pop %v1730
        %v1732 = vmul.f32 %v1706, 1.442695
        %v1733 = vpow.pop %v1732
        %v1734 = vmul.f32 %v1707, 1.442695
        %v1735 = vpow.pop %v1734
        %v1736 = vmul.f32 %v1708, 1.442695
        %v1737 = vpow.pop %v1736
        %v1738 = vmul.f32 %v1709, 1.442695
        %v1739 = vpow.pop %v1738
        %v1740 = vmul.f32 %v1710, 1.442695
        %v1741 = vpow.pop %v1740
        %v1742 = vmul.f32 %v1711, 1.442695
        %v1743 = vpow.pop %v1742
        %1744 = vadd.xlane.f32.xlu0 %v1713
        %v1745 = vpop.xlane.xlu0 %1744
        %1746 = vadd.xlane.f32.xlu0 %v1715
        %v1747 = vpop.xlane.xlu0 %1746
        %1748 = vadd.xlane.f32.xlu0 %v1717
        %v1749 = vpop.xlane.xlu0 %1748
        %1750 = vadd.xlane.f32.xlu0 %v1719
        %v1751 = vpop.xlane.xlu0 %1750
        %1752 = vadd.xlane.f32.xlu0 %v1721
        %v1753 = vpop.xlane.xlu0 %1752
        %1754 = vadd.xlane.f32.xlu0 %v1723
        %v1755 = vpop.xlane.xlu0 %1754
        %1756 = vadd.xlane.f32.xlu0 %v1725
        %v1757 = vpop.xlane.xlu0 %1756
        %1758 = vadd.xlane.f32.xlu0 %v1727
        %v1759 = vpop.xlane.xlu0 %1758
        %1760 = vadd.xlane.f32.xlu0 %v1729
        %v1761 = vpop.xlane.xlu0 %1760
        %1762 = vadd.xlane.f32.xlu0 %v1731
        %v1763 = vpop.xlane.xlu0 %1762
        %1764 = vadd.xlane.f32.xlu0 %v1733
        %v1765 = vpop.xlane.xlu0 %1764
        %1766 = vadd.xlane.f32.xlu0 %v1735
        %v1767 = vpop.xlane.xlu0 %1766
        %1768 = vadd.xlane.f32.xlu0 %v1737
        %v1769 = vpop.xlane.xlu0 %1768
        %1770 = vadd.xlane.f32.xlu0 %v1739
        %v1771 = vpop.xlane.xlu0 %1770
        %1772 = vadd.xlane.f32.xlu0 %v1741
        %v1773 = vpop.xlane.xlu0 %1772
        %1774 = vadd.xlane.f32.xlu0 %v1743
        %v1775 = vpop.xlane.xlu0 %1774
        %v1776 = vrcp.pop %v1745
        %v1777 = vmul.f32 %v1745, %v1776
        %v1778 = vsub.f32 1.0, %v1777
        %v1779 = vmul.f32 %v1776, %v1778
        %v1780 = vadd.f32 %v1776, %v1779
        %vm1781 = vweird.f32 %v1745
        %vm1782 = vweird.f32 %v1776
        %vm1783 = vmor %vm1781, %vm1782
        %v1784 = vsel %vm1783, %v1776, %v1780
        %v1785 = vand.u32 2147483647, %v1745
        %vm1786 = vcmp.eq.f32.partialorder %v1785, 8.507059e+37
        %v1787 = vand.u32 %v1745, 2147483648
        %v1788 = vor.u32 1.1754944e-38, %v1787
        %v1789 = vsel %vm1786, %v1788, %v1784
        %v1790 = vmul.f32 %v1713, %v1789
        %v1791 = vrcp.pop %v1747
        %v1792 = vmul.f32 %v1747, %v1791
        %v1793 = vsub.f32 1.0, %v1792
        %v1794 = vmul.f32 %v1791, %v1793
        %v1795 = vadd.f32 %v1791, %v1794
        %vm1796 = vweird.f32 %v1747
        %vm1797 = vweird.f32 %v1791
        %vm1798 = vmor %vm1796, %vm1797
        %v1799 = vsel %vm1798, %v1791, %v1795
        %v1800 = vand.u32 2147483647, %v1747
        %vm1801 = vcmp.eq.f32.partialorder %v1800, 8.507059e+37
        %v1802 = vand.u32 %v1747, 2147483648
        %v1803 = vor.u32 1.1754944e-38, %v1802
        %v1804 = vsel %vm1801, %v1803, %v1799
        %v1805 = vmul.f32 %v1715, %v1804
        %v1806 = vrcp.pop %v1749
        %v1807 = vmul.f32 %v1749, %v1806
        %v1808 = vsub.f32 1.0, %v1807
        %v1809 = vmul.f32 %v1806, %v1808
        %v1810 = vadd.f32 %v1806, %v1809
        %vm1811 = vweird.f32 %v1749
        %vm1812 = vweird.f32 %v1806
        %vm1813 = vmor %vm1811, %vm1812
        %v1814 = vsel %vm1813, %v1806, %v1810
        %v1815 = vand.u32 2147483647, %v1749
        %vm1816 = vcmp.eq.f32.partialorder %v1815, 8.507059e+37
        %v1817 = vand.u32 %v1749, 2147483648
        %v1818 = vor.u32 1.1754944e-38, %v1817
        %v1819 = vsel %vm1816, %v1818, %v1814
        %v1820 = vmul.f32 %v1717, %v1819
        %v1821 = vrcp.pop %v1751
        %v1822 = vmul.f32 %v1751, %v1821
        %v1823 = vsub.f32 1.0, %v1822
        %v1824 = vmul.f32 %v1821, %v1823
        %v1825 = vadd.f32 %v1821, %v1824
        %vm1826 = vweird.f32 %v1751
        %vm1827 = vweird.f32 %v1821
        %vm1828 = vmor %vm1826, %vm1827
        %v1829 = vsel %vm1828, %v1821, %v1825
        %v1830 = vand.u32 2147483647, %v1751
        %vm1831 = vcmp.eq.f32.partialorder %v1830, 8.507059e+37
        %v1832 = vand.u32 %v1751, 2147483648
        %v1833 = vor.u32 1.1754944e-38, %v1832
        %v1834 = vsel %vm1831, %v1833, %v1829
        %v1835 = vmul.f32 %v1719, %v1834
        %v1836 = vrcp.pop %v1753
        %v1837 = vmul.f32 %v1753, %v1836
        %v1838 = vsub.f32 1.0, %v1837
        %v1839 = vmul.f32 %v1836, %v1838
        %v1840 = vadd.f32 %v1836, %v1839
        %vm1841 = vweird.f32 %v1753
        %vm1842 = vweird.f32 %v1836
        %vm1843 = vmor %vm1841, %vm1842
        %v1844 = vsel %vm1843, %v1836, %v1840
        %v1845 = vand.u32 2147483647, %v1753
        %vm1846 = vcmp.eq.f32.partialorder %v1845, 8.507059e+37
        %v1847 = vand.u32 %v1753, 2147483648
        %v1848 = vor.u32 1.1754944e-38, %v1847
        %v1849 = vsel %vm1846, %v1848, %v1844
        %v1850 = vmul.f32 %v1721, %v1849
        %v1851 = vrcp.pop %v1755
        %v1852 = vmul.f32 %v1755, %v1851
        %v1853 = vsub.f32 1.0, %v1852
        %v1854 = vmul.f32 %v1851, %v1853
        %v1855 = vadd.f32 %v1851, %v1854
        %vm1856 = vweird.f32 %v1755
        %vm1857 = vweird.f32 %v1851
        %vm1858 = vmor %vm1856, %vm1857
        %v1859 = vsel %vm1858, %v1851, %v1855
        %v1860 = vand.u32 2147483647, %v1755
        %vm1861 = vcmp.eq.f32.partialorder %v1860, 8.507059e+37
        %v1862 = vand.u32 %v1755, 2147483648
        %v1863 = vor.u32 1.1754944e-38, %v1862
        %v1864 = vsel %vm1861, %v1863, %v1859
        %v1865 = vmul.f32 %v1723, %v1864
        %v1866 = vrcp.pop %v1757
        %v1867 = vmul.f32 %v1757, %v1866
        %v1868 = vsub.f32 1.0, %v1867
        %v1869 = vmul.f32 %v1866, %v1868
        %v1870 = vadd.f32 %v1866, %v1869
        %vm1871 = vweird.f32 %v1757
        %vm1872 = vweird.f32 %v1866
        %vm1873 = vmor %vm1871, %vm1872
        %v1874 = vsel %vm1873, %v1866, %v1870
        %v1875 = vand.u32 2147483647, %v1757
        %vm1876 = vcmp.eq.f32.partialorder %v1875, 8.507059e+37
        %v1877 = vand.u32 %v1757, 2147483648
        %v1878 = vor.u32 1.1754944e-38, %v1877
        %v1879 = vsel %vm1876, %v1878, %v1874
        %v1880 = vmul.f32 %v1725, %v1879
        %v1881 = vrcp.pop %v1759
        %v1882 = vmul.f32 %v1759, %v1881
        %v1883 = vsub.f32 1.0, %v1882
        %v1884 = vmul.f32 %v1881, %v1883
        %v1885 = vadd.f32 %v1881, %v1884
        %vm1886 = vweird.f32 %v1759
        %vm1887 = vweird.f32 %v1881
        %vm1888 = vmor %vm1886, %vm1887
        %v1889 = vsel %vm1888, %v1881, %v1885
        %v1890 = vand.u32 2147483647, %v1759
        %vm1891 = vcmp.eq.f32.partialorder %v1890, 8.507059e+37
        %v1892 = vand.u32 %v1759, 2147483648
        %v1893 = vor.u32 1.1754944e-38, %v1892
        %v1894 = vsel %vm1891, %v1893, %v1889
        %v1895 = vmul.f32 %v1727, %v1894
        %v1896 = vrcp.pop %v1761
        %v1897 = vmul.f32 %v1761, %v1896
        %v1898 = vsub.f32 1.0, %v1897
        %v1899 = vmul.f32 %v1896, %v1898
        %v1900 = vadd.f32 %v1896, %v1899
        %vm1901 = vweird.f32 %v1761
        %vm1902 = vweird.f32 %v1896
        %vm1903 = vmor %vm1901, %vm1902
        %v1904 = vsel %vm1903, %v1896, %v1900
        %v1905 = vand.u32 2147483647, %v1761
        %vm1906 = vcmp.eq.f32.partialorder %v1905, 8.507059e+37
        %v1907 = vand.u32 %v1761, 2147483648
        %v1908 = vor.u32 1.1754944e-38, %v1907
        %v1909 = vsel %vm1906, %v1908, %v1904
        %v1910 = vmul.f32 %v1729, %v1909
        %v1911 = vrcp.pop %v1763
        %v1912 = vmul.f32 %v1763, %v1911
        %v1913 = vsub.f32 1.0, %v1912
        %v1914 = vmul.f32 %v1911, %v1913
        %v1915 = vadd.f32 %v1911, %v1914
        %vm1916 = vweird.f32 %v1763
        %vm1917 = vweird.f32 %v1911
        %vm1918 = vmor %vm1916, %vm1917
        %v1919 = vsel %vm1918, %v1911, %v1915
        %v1920 = vand.u32 2147483647, %v1763
        %vm1921 = vcmp.eq.f32.partialorder %v1920, 8.507059e+37
        %v1922 = vand.u32 %v1763, 2147483648
        %v1923 = vor.u32 1.1754944e-38, %v1922
        %v1924 = vsel %vm1921, %v1923, %v1919
        %v1925 = vmul.f32 %v1731, %v1924
        %v1926 = vrcp.pop %v1765
        %v1927 = vmul.f32 %v1765, %v1926
        %v1928 = vsub.f32 1.0, %v1927
        %v1929 = vmul.f32 %v1926, %v1928
        %v1930 = vadd.f32 %v1926, %v1929
        %vm1931 = vweird.f32 %v1765
        %vm1932 = vweird.f32 %v1926
        %vm1933 = vmor %vm1931, %vm1932
        %v1934 = vsel %vm1933, %v1926, %v1930
        %v1935 = vand.u32 2147483647, %v1765
        %vm1936 = vcmp.eq.f32.partialorder %v1935, 8.507059e+37
        %v1937 = vand.u32 %v1765, 2147483648
        %v1938 = vor.u32 1.1754944e-38, %v1937
        %v1939 = vsel %vm1936, %v1938, %v1934
        %v1940 = vmul.f32 %v1733, %v1939
        %v1941 = vrcp.pop %v1767
        %v1942 = vmul.f32 %v1767, %v1941
        %v1943 = vsub.f32 1.0, %v1942
        %v1944 = vmul.f32 %v1941, %v1943
        %v1945 = vadd.f32 %v1941, %v1944
        %vm1946 = vweird.f32 %v1767
        %vm1947 = vweird.f32 %v1941
        %vm1948 = vmor %vm1946, %vm1947
        %v1949 = vsel %vm1948, %v1941, %v1945
        %v1950 = vand.u32 2147483647, %v1767
        %vm1951 = vcmp.eq.f32.partialorder %v1950, 8.507059e+37
        %v1952 = vand.u32 %v1767, 2147483648
        %v1953 = vor.u32 1.1754944e-38, %v1952
        %v1954 = vsel %vm1951, %v1953, %v1949
        %v1955 = vmul.f32 %v1735, %v1954
        %v1956 = vrcp.pop %v1769
        %v1957 = vmul.f32 %v1769, %v1956
        %v1958 = vsub.f32 1.0, %v1957
        %v1959 = vmul.f32 %v1956, %v1958
        %v1960 = vadd.f32 %v1956, %v1959
        %vm1961 = vweird.f32 %v1769
        %vm1962 = vweird.f32 %v1956
        %vm1963 = vmor %vm1961, %vm1962
        %v1964 = vsel %vm1963, %v1956, %v1960
        %v1965 = vand.u32 2147483647, %v1769
        %vm1966 = vcmp.eq.f32.partialorder %v1965, 8.507059e+37
        %v1967 = vand.u32 %v1769, 2147483648
        %v1968 = vor.u32 1.1754944e-38, %v1967
        %v1969 = vsel %vm1966, %v1968, %v1964
        %v1970 = vmul.f32 %v1737, %v1969
        %v1971 = vrcp.pop %v1771
        %v1972 = vmul.f32 %v1771, %v1971
        %v1973 = vsub.f32 1.0, %v1972
        %v1974 = vmul.f32 %v1971, %v1973
        %v1975 = vadd.f32 %v1971, %v1974
        %vm1976 = vweird.f32 %v1771
        %vm1977 = vweird.f32 %v1971
        %vm1978 = vmor %vm1976, %vm1977
        %v1979 = vsel %vm1978, %v1971, %v1975
        %v1980 = vand.u32 2147483647, %v1771
        %vm1981 = vcmp.eq.f32.partialorder %v1980, 8.507059e+37
        %v1982 = vand.u32 %v1771, 2147483648
        %v1983 = vor.u32 1.1754944e-38, %v1982
        %v1984 = vsel %vm1981, %v1983, %v1979
        %v1985 = vmul.f32 %v1739, %v1984
        %v1986 = vrcp.pop %v1773
        %v1987 = vmul.f32 %v1773, %v1986
        %v1988 = vsub.f32 1.0, %v1987
        %v1989 = vmul.f32 %v1986, %v1988
        %v1990 = vadd.f32 %v1986, %v1989
        %vm1991 = vweird.f32 %v1773
        %vm1992 = vweird.f32 %v1986
        %vm1993 = vmor %vm1991, %vm1992
        %v1994 = vsel %vm1993, %v1986, %v1990
        %v1995 = vand.u32 2147483647, %v1773
        %vm1996 = vcmp.eq.f32.partialorder %v1995, 8.507059e+37
        %v1997 = vand.u32 %v1773, 2147483648
        %v1998 = vor.u32 1.1754944e-38, %v1997
        %v1999 = vsel %vm1996, %v1998, %v1994
        %v2000 = vmul.f32 %v1741, %v1999
        %v2001 = vrcp.pop %v1775
        %v2002 = vmul.f32 %v1775, %v2001
        %v2003 = vsub.f32 1.0, %v2002
        %v2004 = vmul.f32 %v2001, %v2003
        %v2005 = vadd.f32 %v2001, %v2004
        %vm2006 = vweird.f32 %v1775
        %vm2007 = vweird.f32 %v2001
        %vm2008 = vmor %vm2006, %vm2007
        %v2009 = vsel %vm2008, %v2001, %v2005
        %v2010 = vand.u32 2147483647, %v1775
        %vm2011 = vcmp.eq.f32.partialorder %v2010, 8.507059e+37
        %v2012 = vand.u32 %v1775, 2147483648
        %v2013 = vor.u32 1.1754944e-38, %v2012
        %v2014 = vsel %vm2011, %v2013, %v2009
        %v2015 = vmul.f32 %v1743, %v2014
        %v2016 = vpack.c.bf16 %v1508, %v1508
        %v2017 = vpack.c.bf16 %v1805, %v1790
        %v2018 = vpack.c.bf16 %v1835, %v1820
        %v2019 = vpack.c.bf16 %v1865, %v1850
        %v2020 = vpack.c.bf16 %v1895, %v1880
        %v2021 = vpack.c.bf16 %v1925, %v1910
        %v2022 = vpack.c.bf16 %v1955, %v1940
        %v2023 = vpack.c.bf16 %v1985, %v1970
        %v2024 = vpack.c.bf16 %v2015, %v2000
        %2025 = vmatpush.bf16.xpose.msra.mxu0 %v2024
        %2026 = vmatpush.bf16.xpose.msra.mxu0 %v2023
        %2027 = vmatpush.bf16.xpose.msra.mxu0 %v2022
        %2028 = vmatpush.bf16.xpose.msra.mxu0 %v2021
        %2029 = vmatpush.bf16.xpose.msra.mxu0 %v2020
        %2030 = vmatpush.bf16.xpose.msra.mxu0 %v2019
        %2031 = vmatpush.bf16.xpose.msra.mxu0 %v2018
        %2032 = vmatpush.bf16.xpose.msra.mxu0 %v2017
        %2033 = vmatmul.bf16.gmra.mxu0 %v2016
        %v2034 = vpop.f32.mrf.mxu0
        %v2035 = vadd.f32 0.0, %v2034
        %v2036 = vpop.f32.mrf.mxu0
        %2037 = vdwg.mxu0
        %v2038 = vxor.u32 %v2035, 2147483648
        %v2039 = vmul.f32 %v2038, 1.442695
        %v2040 = vpow.pop %v2039
        %v2041 = vadd.f32 %v2040, 1.0
        %v2042 = vrcp.pop %v2041
        %v2043 = vmul.f32 %v2041, %v2042
        %v2044 = vsub.f32 1.0, %v2043
        %v2045 = vmul.f32 %v2042, %v2044
        %v2046 = vadd.f32 %v2042, %v2045
        %vm2047 = vweird.f32 %v2041
        %vm2048 = vweird.f32 %v2042
        %vm2049 = vmor %vm2047, %vm2048
        %v2050 = vsel %vm2049, %v2042, %v2046
        %v2051 = vand.u32 2147483647, %v2041
        %vm2052 = vcmp.eq.f32.partialorder %v2051, 8.507059e+37
        %v2053 = vand.u32 %v2041, 2147483648
        %v2054 = vor.u32 1.1754944e-38, %v2053
        %v2055 = vsel %vm2052, %v2054, %v2050
        %v2056 = vmul.f32 1.0, %v2055
        %v2057 = vperm.slane %v2056, 0
        %v2058 = vmul.f32 %v2057, %v1520
        %v2059 = vmul.f32 %v2057, %v1523
        %v2060 = vmul.f32 %v2057, %v1525
        %v2061 = vmul.f32 %v2057, %v1528
        %v2062 = vadd.f32 %v1510, %v2058
        %v2063 = vadd.f32 %v1513, %v2059
        %v2064 = vadd.f32 %v1515, %v2060
        %v2065 = vadd.f32 %v1518, %v2061
        %v2066 = vld [vmem:[%s5] sm:$0xf]
        %v2067 = vld [vmem:[%s5 + $0x4] sm:$0xf]
        %v2068 = vld [vmem:[%s5 + $0x8] sm:$0xf]
        %v2069 = vld [vmem:[%s5 + $0xc] sm:$0xf]
        %v2070 = vld [vmem:[%s5 + $0x10] sm:$0xf]
        %v2071 = vld [vmem:[%s5 + $0x14] sm:$0xf]
        %v2072 = vld [vmem:[%s5 + $0x18] sm:$0xf]
        %v2073 = vld [vmem:[%s5 + $0x1c] sm:$0xf]
        %v2074 = vld [vmem:[%s5 + $0x20] sm:$0xf]
        %v2075 = vld [vmem:[%s5 + $0x24] sm:$0xf]
        %v2076 = vld [vmem:[%s5 + $0x28] sm:$0xf]
        %v2077 = vld [vmem:[%s5 + $0x2c] sm:$0xf]
        %v2078 = vpack.c.bf16 %v2063, %v2062
        %v2079 = vpack.c.bf16 %v2065, %v2064
        %v2080 = vld [vmem:[%s6] sm:$0xff]
        %v2081 = vld [vmem:[%s6 + $0x8] sm:$0xff]
        %v2082 = vld [vmem:[%s6 + $0x10] sm:$0xff]
        %v2083 = vld [vmem:[%s6 + $0x18] sm:$0xff]
        %v2084 = vld [vmem:[%s6 + $0x20] sm:$0xff]
        %v2085 = vld [vmem:[%s6 + $0x28] sm:$0xff]
        %v2086 = vld [vmem:[%s6 + $0x30] sm:$0xff]
        %v2087 = vld [vmem:[%s6 + $0x38] sm:$0xff]
        %v2088 = vld [vmem:[%s6 + $0x40] sm:$0xff]
        %v2089 = vld [vmem:[%s6 + $0x48] sm:$0xff]
        %v2090 = vld [vmem:[%s6 + $0x50] sm:$0xff]
        %v2091 = vld [vmem:[%s6 + $0x58] sm:$0xff]
        %2093 = vset.pattern.permute.xlu0 0
        %2094 = vperm.xlu0 %2093, %v2080
        %v2095 = vpop.permute.xlu0 %2094
        %2098 = vset.pattern.permute.xlu0 0
        %2099 = vperm.xlu0 %2098, %v2081
        %v2100 = vpop.permute.xlu0 %2099
        %2103 = vset.pattern.permute.xlu0 0
        %2104 = vperm.xlu0 %2103, %v2082
        %v2105 = vpop.permute.xlu0 %2104
        %2108 = vset.pattern.permute.xlu0 0
        %2109 = vperm.xlu0 %2108, %v2083
        %v2110 = vpop.permute.xlu0 %2109
        %2113 = vset.pattern.permute.xlu0 0
        %2114 = vperm.xlu0 %2113, %v2084
        %v2115 = vpop.permute.xlu0 %2114
        %2118 = vset.pattern.permute.xlu0 0
        %2119 = vperm.xlu0 %2118, %v2085
        %v2120 = vpop.permute.xlu0 %2119
        %2123 = vset.pattern.permute.xlu0 0
        %2124 = vperm.xlu0 %2123, %v2086
        %v2125 = vpop.permute.xlu0 %2124
        %2128 = vset.pattern.permute.xlu0 0
        %2129 = vperm.xlu0 %2128, %v2087
        %v2130 = vpop.permute.xlu0 %2129
        %2133 = vset.pattern.permute.xlu0 0
        %2134 = vperm.xlu0 %2133, %v2088
        %v2135 = vpop.permute.xlu0 %2134
        %2138 = vset.pattern.permute.xlu0 0
        %2139 = vperm.xlu0 %2138, %v2089
        %v2140 = vpop.permute.xlu0 %2139
        %2143 = vset.pattern.permute.xlu0 0
        %2144 = vperm.xlu0 %2143, %v2090
        %v2145 = vpop.permute.xlu0 %2144
        %2148 = vset.pattern.permute.xlu0 0
        %2149 = vperm.xlu0 %2148, %v2091
        %v2150 = vpop.permute.xlu0 %2149
        %v2164 = vunpack.c.l.b16 %v2066
        %v2165 = vunpack.c.l.b16 %v2067
        %v2166 = vunpack.c.l.b16 %v2068
        %v2167 = vunpack.c.l.b16 %v2069
        %v2168 = vunpack.c.l.b16 %v2070
        %v2169 = vunpack.c.l.b16 %v2071
        %v2170 = vunpack.c.l.b16 %v2072
        %v2171 = vunpack.c.l.b16 %v2073
        %v2172 = vunpack.c.l.b16 %v2074
        %v2173 = vunpack.c.l.b16 %v2075
        %v2174 = vunpack.c.l.b16 %v2076
        %v2175 = vunpack.c.l.b16 %v2077
        %v2176 = vpack.c.b16 %v2165, %v2164
        %v2177 = vpack.c.b16 %v2167, %v2166
        %v2178 = vpack.c.b16 %v2169, %v2168
        %v2179 = vpack.c.b16 %v2171, %v2170
        %v2180 = vpack.c.b16 %v2173, %v2172
        %v2181 = vpack.c.b16 %v2175, %v2174
        %v2183 = vsel %vm1450, %v2176, 0
        %v2186 = vsel %vm1450, %v2177, 0
        %v2189 = vsel %vm1450, %v2178, 0
        %v2192 = vsel %vm1450, %v2179, 0
        %v2195 = vsel %vm1450, %v2180, 0
        %v2198 = vsel %vm1450, %v2181, 0
        %v2201 = vsel %vm1484, %v2079, 0
        %2203 = vmatpush.bf16.msra.mxu0 0
        %2204 = vmatpush.bf16.msra.mxu0 0
        %2205 = vmatpush.bf16.msra.mxu0 0
        %2206 = vmatpush.bf16.msra.mxu0 0
        %2207 = vmatpush.bf16.msra.mxu0 0
        %2208 = vmatpush.bf16.msra.mxu0 0
        %2209 = vmatpush.bf16.msra.mxu0 %v2201
        %2210 = vmatpush.bf16.msra.mxu0 %v2078
        %2211 = vmatmul.bf16.gmra.mxu0 %v2183
        %v2212 = vpop.f32.mrf.mxu0
        %v2213 = vadd.f32 %v2095, %v2212
        %v2214 = vpop.f32.mrf.mxu0
        %v2215 = vadd.f32 %v2100, %v2214
        %2216 = vmatmul.bf16.gmra.mxu0 %v2186
        %v2217 = vpop.f32.mrf.mxu0
        %v2218 = vadd.f32 %v2105, %v2217
        %v2219 = vpop.f32.mrf.mxu0
        %v2220 = vadd.f32 %v2110, %v2219
        %2221 = vmatmul.bf16.gmra.mxu0 %v2189
        %v2222 = vpop.f32.mrf.mxu0
        %v2223 = vadd.f32 %v2115, %v2222
        %v2224 = vpop.f32.mrf.mxu0
        %v2225 = vadd.f32 %v2120, %v2224
        %2226 = vmatmul.bf16.gmra.mxu0 %v2192
        %v2227 = vpop.f32.mrf.mxu0
        %v2228 = vadd.f32 %v2125, %v2227
        %v2229 = vpop.f32.mrf.mxu0
        %v2230 = vadd.f32 %v2130, %v2229
        %2231 = vmatmul.bf16.gmra.mxu0 %v2195
        %v2232 = vpop.f32.mrf.mxu0
        %v2233 = vadd.f32 %v2135, %v2232
        %v2234 = vpop.f32.mrf.mxu0
        %v2235 = vadd.f32 %v2140, %v2234
        %2236 = vmatmul.bf16.gmra.mxu0 %v2198
        %v2237 = vpop.f32.mrf.mxu0
        %v2238 = vadd.f32 %v2145, %v2237
        %v2239 = vpop.f32.mrf.mxu0
        %v2240 = vadd.f32 %v2150, %v2239
        %2241 = vdwg.mxu0
        %v2242 = vadd.f32 %v2213, %v1530
        %v2243 = vadd.f32 %v2215, %v1533
        %v2244 = vadd.f32 %v2218, %v1535
        %v2245 = vadd.f32 %v2220, %v1538
        %v2246 = vxor.u32 %v2242, 2147483648
        %v2247 = vxor.u32 %v2243, 2147483648
        %v2248 = vxor.u32 %v2244, 2147483648
        %v2249 = vxor.u32 %v2245, 2147483648
        %v2250 = vmul.f32 %v2246, 1.442695
        %v2251 = vpow.pop %v2250
        %v2252 = vmul.f32 %v2247, 1.442695
        %v2253 = vpow.pop %v2252
        %v2254 = vmul.f32 %v2248, 1.442695
        %v2255 = vpow.pop %v2254
        %v2256 = vmul.f32 %v2249, 1.442695
        %v2257 = vpow.pop %v2256
        %v2258 = vadd.f32 %v2251, 1.0
        %v2259 = vadd.f32 %v2253, 1.0
        %v2260 = vadd.f32 %v2255, 1.0
        %v2261 = vadd.f32 %v2257, 1.0
        %v2262 = vrcp.pop %v2258
        %v2263 = vmul.f32 %v2258, %v2262
        %v2264 = vsub.f32 1.0, %v2263
        %v2265 = vmul.f32 %v2262, %v2264
        %v2266 = vadd.f32 %v2262, %v2265
        %vm2267 = vweird.f32 %v2258
        %vm2268 = vweird.f32 %v2262
        %vm2269 = vmor %vm2267, %vm2268
        %v2270 = vsel %vm2269, %v2262, %v2266
        %v2271 = vand.u32 2147483647, %v2258
        %vm2272 = vcmp.eq.f32.partialorder %v2271, 8.507059e+37
        %v2273 = vand.u32 %v2258, 2147483648
        %v2274 = vor.u32 1.1754944e-38, %v2273
        %v2275 = vsel %vm2272, %v2274, %v2270
        %v2276 = vmul.f32 1.0, %v2275
        %v2277 = vrcp.pop %v2259
        %v2278 = vmul.f32 %v2259, %v2277
        %v2279 = vsub.f32 1.0, %v2278
        %v2280 = vmul.f32 %v2277, %v2279
        %v2281 = vadd.f32 %v2277, %v2280
        %vm2282 = vweird.f32 %v2259
        %vm2283 = vweird.f32 %v2277
        %vm2284 = vmor %vm2282, %vm2283
        %v2285 = vsel %vm2284, %v2277, %v2281
        %v2286 = vand.u32 2147483647, %v2259
        %vm2287 = vcmp.eq.f32.partialorder %v2286, 8.507059e+37
        %v2288 = vand.u32 %v2259, 2147483648
        %v2289 = vor.u32 1.1754944e-38, %v2288
        %v2290 = vsel %vm2287, %v2289, %v2285
        %v2291 = vmul.f32 1.0, %v2290
        %v2292 = vrcp.pop %v2260
        %v2293 = vmul.f32 %v2260, %v2292
        %v2294 = vsub.f32 1.0, %v2293
        %v2295 = vmul.f32 %v2292, %v2294
        %v2296 = vadd.f32 %v2292, %v2295
        %vm2297 = vweird.f32 %v2260
        %vm2298 = vweird.f32 %v2292
        %vm2299 = vmor %vm2297, %vm2298
        %v2300 = vsel %vm2299, %v2292, %v2296
        %v2301 = vand.u32 2147483647, %v2260
        %vm2302 = vcmp.eq.f32.partialorder %v2301, 8.507059e+37
        %v2303 = vand.u32 %v2260, 2147483648
        %v2304 = vor.u32 1.1754944e-38, %v2303
        %v2305 = vsel %vm2302, %v2304, %v2300
        %v2306 = vmul.f32 1.0, %v2305
        %v2307 = vrcp.pop %v2261
        %v2308 = vmul.f32 %v2261, %v2307
        %v2309 = vsub.f32 1.0, %v2308
        %v2310 = vmul.f32 %v2307, %v2309
        %v2311 = vadd.f32 %v2307, %v2310
        %vm2312 = vweird.f32 %v2261
        %vm2313 = vweird.f32 %v2307
        %vm2314 = vmor %vm2312, %vm2313
        %v2315 = vsel %vm2314, %v2307, %v2311
        %v2316 = vand.u32 2147483647, %v2261
        %vm2317 = vcmp.eq.f32.partialorder %v2316, 8.507059e+37
        %v2318 = vand.u32 %v2261, 2147483648
        %v2319 = vor.u32 1.1754944e-38, %v2318
        %v2320 = vsel %vm2317, %v2319, %v2315
        %v2321 = vmul.f32 1.0, %v2320
        %v2322 = vadd.f32 %v2223, %v1540
        %v2323 = vadd.f32 %v2225, %v1543
        %v2324 = vadd.f32 %v2228, %v1545
        %v2325 = vadd.f32 %v2230, %v1548
        %v2326 = vxor.u32 %v2322, 2147483648
        %v2327 = vxor.u32 %v2323, 2147483648
        %v2328 = vxor.u32 %v2324, 2147483648
        %v2329 = vxor.u32 %v2325, 2147483648
        %v2330 = vmul.f32 %v2326, 1.442695
        %v2331 = vpow.pop %v2330
        %v2332 = vmul.f32 %v2327, 1.442695
        %v2333 = vpow.pop %v2332
        %v2334 = vmul.f32 %v2328, 1.442695
        %v2335 = vpow.pop %v2334
        %v2336 = vmul.f32 %v2329, 1.442695
        %v2337 = vpow.pop %v2336
        %v2338 = vadd.f32 %v2331, 1.0
        %v2339 = vadd.f32 %v2333, 1.0
        %v2340 = vadd.f32 %v2335, 1.0
        %v2341 = vadd.f32 %v2337, 1.0
        %v2342 = vrcp.pop %v2338
        %v2343 = vmul.f32 %v2338, %v2342
        %v2344 = vsub.f32 1.0, %v2343
        %v2345 = vmul.f32 %v2342, %v2344
        %v2346 = vadd.f32 %v2342, %v2345
        %vm2347 = vweird.f32 %v2338
        %vm2348 = vweird.f32 %v2342
        %vm2349 = vmor %vm2347, %vm2348
        %v2350 = vsel %vm2349, %v2342, %v2346
        %v2351 = vand.u32 2147483647, %v2338
        %vm2352 = vcmp.eq.f32.partialorder %v2351, 8.507059e+37
        %v2353 = vand.u32 %v2338, 2147483648
        %v2354 = vor.u32 1.1754944e-38, %v2353
        %v2355 = vsel %vm2352, %v2354, %v2350
        %v2356 = vmul.f32 1.0, %v2355
        %v2357 = vrcp.pop %v2339
        %v2358 = vmul.f32 %v2339, %v2357
        %v2359 = vsub.f32 1.0, %v2358
        %v2360 = vmul.f32 %v2357, %v2359
        %v2361 = vadd.f32 %v2357, %v2360
        %vm2362 = vweird.f32 %v2339
        %vm2363 = vweird.f32 %v2357
        %vm2364 = vmor %vm2362, %vm2363
        %v2365 = vsel %vm2364, %v2357, %v2361
        %v2366 = vand.u32 2147483647, %v2339
        %vm2367 = vcmp.eq.f32.partialorder %v2366, 8.507059e+37
        %v2368 = vand.u32 %v2339, 2147483648
        %v2369 = vor.u32 1.1754944e-38, %v2368
        %v2370 = vsel %vm2367, %v2369, %v2365
        %v2371 = vmul.f32 1.0, %v2370
        %v2372 = vrcp.pop %v2340
        %v2373 = vmul.f32 %v2340, %v2372
        %v2374 = vsub.f32 1.0, %v2373
        %v2375 = vmul.f32 %v2372, %v2374
        %v2376 = vadd.f32 %v2372, %v2375
        %vm2377 = vweird.f32 %v2340
        %vm2378 = vweird.f32 %v2372
        %vm2379 = vmor %vm2377, %vm2378
        %v2380 = vsel %vm2379, %v2372, %v2376
        %v2381 = vand.u32 2147483647, %v2340
        %vm2382 = vcmp.eq.f32.partialorder %v2381, 8.507059e+37
        %v2383 = vand.u32 %v2340, 2147483648
        %v2384 = vor.u32 1.1754944e-38, %v2383
        %v2385 = vsel %vm2382, %v2384, %v2380
        %v2386 = vmul.f32 1.0, %v2385
        %v2387 = vrcp.pop %v2341
        %v2388 = vmul.f32 %v2341, %v2387
        %v2389 = vsub.f32 1.0, %v2388
        %v2390 = vmul.f32 %v2387, %v2389
        %v2391 = vadd.f32 %v2387, %v2390
        %vm2392 = vweird.f32 %v2341
        %vm2393 = vweird.f32 %v2387
        %vm2394 = vmor %vm2392, %vm2393
        %v2395 = vsel %vm2394, %v2387, %v2391
        %v2396 = vand.u32 2147483647, %v2341
        %vm2397 = vcmp.eq.f32.partialorder %v2396, 8.507059e+37
        %v2398 = vand.u32 %v2341, 2147483648
        %v2399 = vor.u32 1.1754944e-38, %v2398
        %v2400 = vsel %vm2397, %v2399, %v2395
        %v2401 = vmul.f32 1.0, %v2400
        %v2402 = vld [vmem:[%s7] sm:$0xf]
        %v2403 = vld [vmem:[%s7 + $0x4] sm:$0xf]
        %v2404 = vld [vmem:[%s7 + $0x8] sm:$0xf]
        %v2405 = vld [vmem:[%s7 + $0xc] sm:$0x3]
        %v2406 = vmul.f32 %v1244, %v2356
        %v2407 = vmul.f32 %v1245, %v2371
        %v2408 = vmul.f32 %v1246, %v2386
        %v2409 = vmul.f32 %v1247, %v2401
        %v2410 = vpack.c.bf16 %v2407, %v2406
        %v2411 = vpack.c.bf16 %v2409, %v2408
        %v2416 = vunpack.c.l.b16 %v2402
        %v2417 = vunpack.c.l.b16 %v2403
        %v2418 = vunpack.c.l.b16 %v2404
        %v2419 = vunpack.c.l.b16 %v2405
        %v2420 = vpack.c.b16 %v2417, %v2416
        %v2421 = vpack.c.b16 %v2419, %v2418
        %v2423 = vsel %vm1450, %v2420, 0
        %v2426 = vsel %vm1450, %v2421, 0
        %v2429 = vsel %vm1484, %v2411, 0
        %2431 = vmatpush.bf16.msra.mxu0 0
        %2432 = vmatpush.bf16.msra.mxu0 0
        %2433 = vmatpush.bf16.msra.mxu0 0
        %2434 = vmatpush.bf16.msra.mxu0 0
        %2435 = vmatpush.bf16.msra.mxu0 0
        %2436 = vmatpush.bf16.msra.mxu0 0
        %2437 = vmatpush.bf16.msra.mxu0 %v2429
        %2438 = vmatpush.bf16.msra.mxu0 %v2410
        %2439 = vmatmul.bf16.gmra.mxu0 %v2423
        %v2440 = vpop.f32.mrf.mxu0
        %v2441 = vadd.f32 0.0, %v2440
        %v2442 = vpop.f32.mrf.mxu0
        %v2443 = vadd.f32 0.0, %v2442
        %2444 = vmatmul.bf16.gmra.mxu0 %v2426
        %v2445 = vpop.f32.mrf.mxu0
        %v2446 = vadd.f32 0.0, %v2445
        %v2447 = vpop.f32.mrf.mxu0
        %v2448 = vadd.f32 0.0, %v2447
        %2449 = vdwg.mxu0
        %v2450 = vadd.f32 %v2233, %v2441
        %v2451 = vadd.f32 %v2235, %v2443
        %v2452 = vadd.f32 %v2238, %v2446
        %v2453 = vadd.f32 %v2240, %v2448
        %v2454 = vtanh.pop %v2450
        %v2455 = vtanh.pop %v2451
        %v2456 = vtanh.pop %v2452
        %v2457 = vtanh.pop %v2453
        %v2458 = vsub.f32 1.0, %v2276
        %v2459 = vsub.f32 1.0, %v2291
        %v2460 = vsub.f32 1.0, %v2306
        %v2461 = vsub.f32 1.0, %v2321
        %v2462 = vmul.f32 %v1244, %v2458
        %v2463 = vmul.f32 %v1245, %v2459
        %v2464 = vmul.f32 %v1246, %v2460
        %v2465 = vmul.f32 %v1247, %v2461
        %v2466 = vmul.f32 %v2454, %v2276
        %v2467 = vmul.f32 %v2455, %v2291
        %v2468 = vmul.f32 %v2456, %v2306
        %v2469 = vmul.f32 %v2457, %v2321
        %v2470 = vadd.f32 %v2462, %v2466
        %v2471 = vadd.f32 %v2463, %v2467
        %v2472 = vadd.f32 %v2464, %v2468
        %v2473 = vadd.f32 %v2465, %v2469
        %2474 = vst [vmem:[%s436] sm:$0xff] %v2470
        %2475 = vst [vmem:[%s436 + $0x8] sm:$0xff] %v2471
        %2476 = vst [vmem:[%s436 + $0x10] sm:$0xff] %v2472
        %2477 = vst [vmem:[%s436 + $0x18] sm:$0xf] %v2473
        %v2478 = vcvt.s32.f32 %v1646
        %v2479 = vmul.f32 %v1244, %v2478
        %v2480 = vmul.f32 %v1245, %v2478
        %v2481 = vmul.f32 %v1246, %v2478
        %v2482 = vmul.f32 %v1247, %v2478
        %2483 = vadd.xlane.f32.xlu0 %v2479
        %v2484 = vpop.xlane.xlu0 %2483
        %2485 = vadd.xlane.f32.xlu0 %v2480
        %v2486 = vpop.xlane.xlu0 %2485
        %2487 = vadd.xlane.f32.xlu0 %v2481
        %v2488 = vpop.xlane.xlu0 %2487
        %vm2489 = vcmask 1043456
        %v2490 = vsel %vm2489, %v2482, 0.0
        %2491 = vadd.xlane.f32.xlu0 %v2490
        %v2492 = vpop.xlane.xlu0 %2491
        %v2493 = vmul.f32 %v2484, 0.015625
        %v2494 = vmul.f32 %v2486, 0.015625
        %v2495 = vmul.f32 %v2488, 0.015625
        %v2496 = vmul.f32 %v2492, 0.015625
        %vm2497 = vcmask 7168
        %2498 = vst.msk [vmem:[%s441] sm:$0xff] %vm2497, %v2493
        %2499 = vst.msk [vmem:[%s441 + $0x8] sm:$0xff] %vm2497, %v2494
        %2500 = vst.msk [vmem:[%s441 + $0x10] sm:$0xff] %vm2497, %v2495
        %vm2501 = vcmask 3072
        %2502 = vst.msk [vmem:[%s441 + $0x18] sm:$0xf] %vm2501, %v2496
        %v2503 = vmul.f32 %v2470, %v2478
        %v2504 = vmul.f32 %v2471, %v2478
        %v2505 = vmul.f32 %v2472, %v2478
        %v2506 = vmul.f32 %v2473, %v2478
        %2507 = vadd.xlane.f32.xlu0 %v2503
        %v2508 = vpop.xlane.xlu0 %2507
        %2509 = vadd.xlane.f32.xlu0 %v2504
        %v2510 = vpop.xlane.xlu0 %2509
        %2511 = vadd.xlane.f32.xlu0 %v2505
        %v2512 = vpop.xlane.xlu0 %2511
        %v2513 = vsel %vm2489, %v2506, 0.0
        %2514 = vadd.xlane.f32.xlu0 %v2513
        %v2515 = vpop.xlane.xlu0 %2514
        %v2516 = vmul.f32 %v2508, 0.015625
        %v2517 = vmul.f32 %v2510, 0.015625
        %v2518 = vmul.f32 %v2512, 0.015625
        %v2519 = vmul.f32 %v2515, 0.015625
        %2520 = vst.msk [vmem:[%s446] sm:$0xff] %vm2497, %v2516
        %2521 = vst.msk [vmem:[%s446 + $0x8] sm:$0xff] %vm2497, %v2517
        %2522 = vst.msk [vmem:[%s446 + $0x10] sm:$0xff] %vm2497, %v2518
        %2523 = vst.msk [vmem:[%s446 + $0x18] sm:$0xf] %vm2501, %v2519
      $region56: #{snet_forward.1} parent=51 // pred_fallthru
        _
      %p2524 = scmp.lt.s32.totalorder %s27, 1
      %s2525 = scalar_select %p2524, %s27, 1
      %s2526 = smul.addr %s2525, 4
      %s2527 = smul.addr %s2526, 8
      %s2528 = scalar_lea.vmem %s8, %s2527
      %p2529 = scmp.lt.s32.totalorder %s27, 1
      %s2530 = scalar_select %p2529, %s27, 1
      %s2531 = smul.addr %s2530, 4
      %s2532 = smul.addr %s2531, 8
      %s2533 = scalar_lea.vmem %s9, %s2532
      %p2534 = scmp.lt.s32.totalorder %s27, 1
      %s2535 = scalar_select %p2534, %s27, 1
      %s2536 = smul.addr %s2535, 4
      %s2537 = smul.addr %s2536, 8
      %s2538 = scalar_lea.vmem %s10, %s2537
      %p2539 = scmp.lt.s32.totalorder %s27, 1
      %s2540 = scalar_select %p2539, %s27, 1
      %s2541 = smul.addr %s2540, 4
      %s2542 = smul.addr %s2541, 8
      %s2543 = scalar_lea.vmem %s11, %s2542
      // Predicated region
      $region57: #{snet_forward.1} parent=51 // pred_check
        %p2544 = pneg %p228
      $region58: #{snet_forward.1} parent=51 // pred_check_branch
        %2546 = sbr.rel (%p2544) target = $region60
      $region59: #{snet_forward.1} parent=51 // pred_region
        _
      $region60: #{snet_forward.1} parent=51 // pred_fallthru
        _
      // Predicated region
      $region61: #{snet_forward.1} parent=51 // pred_check
        %p2547 = pneg %p254
      $region62: #{snet_forward.1} parent=51 // pred_check_branch
        %2549 = sbr.rel (%p2547) target = $region64
      $region63: #{snet_forward.1} parent=51 // pred_region
        _
      $region64: #{snet_forward.1} parent=51 // pred_fallthru
        _
      // Predicated region
      $region65: #{snet_forward.1} parent=51 // pred_check
        %p2550 = pneg %p280
      $region66: #{snet_forward.1} parent=51 // pred_check_branch
        %2552 = sbr.rel (%p2550) target = $region68
      $region67: #{snet_forward.1} parent=51 // pred_region
        _
      $region68: #{snet_forward.1} parent=51 // pred_fallthru
        _
      // Predicated region
      $region69: #{snet_forward.1} parent=51 // pred_check
        %p2553 = pneg %p306
      $region70: #{snet_forward.1} parent=51 // pred_check_branch
        %2555 = sbr.rel (%p2553) target = $region72
      $region71: #{snet_forward.1} parent=51 // pred_region
        _
      $region72: #{snet_forward.1} parent=51 // pred_fallthru
        _
    $region52: #{snet_forward.1} parent=5 // pred_fallthru
      _
    %p2556 = scmp.le.s32.totalorder 2, %s18
    // Predicated region
    $region73: #{snet_forward.1} parent=5 // pred_check
      %p2557 = pneg %p2556
    $region74: #{snet_forward.1} parent=5 // pred_check_branch
      %2559 = sbr.rel (%p2557) target = $region76
    $region75: #{snet_forward.1} parent=5 // pred_region
      %s2560 = ssub.s32 %s18, 2
      // Predicated region
      $region77: #{snet_forward.1} parent=75 // pred_check
        %p2561 = pneg %p234
      $region78: #{snet_forward.1} parent=75 // pred_check_branch
        %2563 = sbr.rel (%p2561) target = $region80
      $region79: #{snet_forward.1} parent=75 // pred_region
        %p2564 = scmp.lt.s32.totalorder %s29, 1
        %s2565 = scalar_select %p2564, %s29, 1
        %s2566 = smul.addr %s2565, 4
        %s2567 = smul.addr %s2566, 8
        %s2568 = scalar_lea.vmem %s8, %s2567
      $region80: #{snet_forward.1} parent=75 // pred_fallthru
        _
      // Predicated region
      $region81: #{snet_forward.1} parent=75 // pred_check
        %p2569 = pneg %p260
      $region82: #{snet_forward.1} parent=75 // pred_check_branch
        %2571 = sbr.rel (%p2569) target = $region84
      $region83: #{snet_forward.1} parent=75 // pred_region
        %p2572 = scmp.lt.s32.totalorder %s29, 1
        %s2573 = scalar_select %p2572, %s29, 1
        %s2574 = smul.addr %s2573, 4
        %s2575 = smul.addr %s2574, 8
        %s2576 = scalar_lea.vmem %s9, %s2575
      $region84: #{snet_forward.1} parent=75 // pred_fallthru
        _
      // Predicated region
      $region85: #{snet_forward.1} parent=75 // pred_check
        %p2577 = pneg %p286
      $region86: #{snet_forward.1} parent=75 // pred_check_branch
        %2579 = sbr.rel (%p2577) target = $region88
      $region87: #{snet_forward.1} parent=75 // pred_region
        %p2580 = scmp.lt.s32.totalorder %s29, 1
        %s2581 = scalar_select %p2580, %s29, 1
        %s2582 = smul.addr %s2581, 4
        %s2583 = smul.addr %s2582, 8
        %s2584 = scalar_lea.vmem %s10, %s2583
      $region88: #{snet_forward.1} parent=75 // pred_fallthru
        _
      // Predicated region
      $region89: #{snet_forward.1} parent=75 // pred_check
        %p2585 = pneg %p312
      $region90: #{snet_forward.1} parent=75 // pred_check_branch
        %2587 = sbr.rel (%p2585) target = $region92
      $region91: #{snet_forward.1} parent=75 // pred_region
        %p2588 = scmp.lt.s32.totalorder %s29, 1
        %s2589 = scalar_select %p2588, %s29, 1
        %s2590 = smul.addr %s2589, 4
        %s2591 = smul.addr %s2590, 8
        %s2592 = scalar_lea.vmem %s11, %s2591
      $region92: #{snet_forward.1} parent=75 // pred_fallthru
        _
    $region76: #{snet_forward.1} parent=5 // pred_fallthru
      _
  $region6: #{snet_forward.1} parent=0 // loop_footer
    %s22 = sadd.s32 1, %s18
  $region7: #{snet_forward.1} parent=0 // loop_footer_branch
    %17 = sbr.rel target = $region3
  $region8: #{snet_forward.1} parent=0 // loop_exit
    _

</llo_original>
